<compile_context>
chip_gen: v6e
topology: v6e:2x2x1
jax: 0.10.0
libtpu: 0.0.40
codegen_flags: <defaults>
</compile_context>

<pallas_src>
import functools

import jax
import jax.numpy as jnp
from jax.experimental import pallas as pl
from jax.experimental.pallas import tpu as pltpu


def _align8(n):
    return (n + 7) // 8 * 8


def _slab_layout(latent, emb, hid):
    """8-aligned row offsets of each parameter inside the packed slab."""
    sizes = [("wih1", latent), ("whh1", emb), ("wih2", emb), ("whh2", hid),
             ("wout", hid), ("b1", 1), ("b2", 1), ("bout", 1)]
    offs, r = {}, 0
    for name, n in sizes:
        offs[name] = r
        r += _align8(n)
    return offs, r


def _reorder_gates(w, hs):
    """Trace-time column permutation: PyTorch [i, f, g, o] -> kernel [i, f, o, g]."""
    return jnp.concatenate(
        [w[:, :2 * hs], w[:, 3 * hs:4 * hs], w[:, 2 * hs:3 * hs]], axis=-1)


def _gate_update(gates, c, hs):
    """LSTM nonlinearity + state update with [i, f, o, g] column order."""
    s = jax.nn.sigmoid(gates[:, :3 * hs])          # one contiguous sigmoid: i|f|o
    g = jnp.tanh(gates[:, 3 * hs:4 * hs])          # one tanh: g
    i = s[:, 0 * hs:1 * hs]
    f = s[:, 1 * hs:2 * hs]
    o = s[:, 2 * hs:3 * hs]
    c_new = f * c + i * g
    h_new = o * jnp.tanh(c_new)
    return h_new, c_new


def decoder_kernel(z_ref, w_ref, out_ref, *, seq_len, latent, emb, hid):
    B = z_ref.shape[0]
    G1 = 4 * emb
    G2 = 4 * hid
    offs, _ = _slab_layout(latent, emb, hid)

    # One-time weight / bias loads via static slices of the packed slab.
    wih1 = w_ref[offs["wih1"]:offs["wih1"] + latent, :G1]
    whh1 = w_ref[offs["whh1"]:offs["whh1"] + emb, :G1]
    wih2 = w_ref[offs["wih2"]:offs["wih2"] + emb, :G2]
    whh2 = w_ref[offs["whh2"]:offs["whh2"] + hid, :G2]
    wout = w_ref[offs["wout"]:offs["wout"] + hid, :]   # full lane width -> lane-dense output
    b1 = w_ref[offs["b1"]:offs["b1"] + 1, :G1]
    b2 = w_ref[offs["b2"]:offs["b2"] + 1, :G2]
    bout = w_ref[offs["bout"]:offs["bout"] + 1, :]

    # z is repeated over time in the PyTorch module, so its LSTMdec gate
    # contribution is time-invariant: compute it exactly once.
    zw = jnp.dot(z_ref[...], wih1, preferred_element_type=jnp.float32) + b1

    # Hoisted bias broadcast (JAX does not CSE broadcast_in_dim in the unroll).
    b2b = jnp.broadcast_to(b2, (B, G2))

    # Zero-initialized recurrent state (PyTorch default), carried as values.
    h1 = jnp.zeros((B, emb), jnp.float32)
    c1 = jnp.zeros((B, emb), jnp.float32)
    h2 = jnp.zeros((B, hid), jnp.float32)
    c2 = jnp.zeros((B, hid), jnp.float32)

    h2_steps = []
    for _ in range(seq_len):
        # LSTMdec: gates = zW (hoisted) + h1 @ W_hh  -> one matmul per step.
        gates1 = zw + jnp.dot(h1, whh1, preferred_element_type=jnp.float32)
        h1, c1 = _gate_update(gates1, c1, emb)

        # LSTM1: two back-to-back matmuls; no lane-axis concat on the critical path.
        gates2 = (jnp.dot(h1, wih2, preferred_element_type=jnp.float32)
                  + jnp.dot(h2, whh2, preferred_element_type=jnp.float32)
                  + b2b)
        h2, c2 = _gate_update(gates2, c2, hid)
        h2_steps.append(h2)

    # Deferred output projection: one matmul + one lane-dense store after the loop.
    h2_all = jnp.concatenate(h2_steps, axis=0)                 # (seq_len*B, hid), t-major
    y = jnp.dot(h2_all, wout, preferred_element_type=jnp.float32) + bout
    out_ref[...] = y.astype(out_ref.dtype)


def decoder_vaev_forward(z, params, seq_len):
    B, latent = z.shape
    emb = params["whh1"].shape[0]
    hid = params["whh2"].shape[0]
    out_size = params["wout"].shape[1]
    g1, g2 = 4 * emb, 4 * hid

    # Trace-time gate-column permutation [i,f,g,o] -> [i,f,o,g] (free).
    wih1 = _reorder_gates(params["wih1"], emb)
    whh1 = _reorder_gates(params["whh1"], emb)
    b1 = _reorder_gates(params["b1"], emb)
    wih2 = _reorder_gates(params["wih2"], hid)
    whh2 = _reorder_gates(params["whh2"], hid)
    b2 = _reorder_gates(params["b2"], hid)

    # Pack every weight / bias into one lane-padded slab -> a single input DMA.
    offs, rows = _slab_layout(latent, emb, hid)
    lane = max(128, -(-max(g1, g2, out_size) // 128) * 128)

    def place(slab, name, w):
        r, c = w.shape
        return slab.at[offs[name]:offs[name] + r, :c].set(w)

    slab = jnp.zeros((rows, lane), jnp.float32)
    slab = place(slab, "wih1", wih1)
    slab = place(slab, "whh1", whh1)
    slab = place(slab, "wih2", wih2)
    slab = place(slab, "whh2", whh2)
    slab = place(slab, "wout", params["wout"])
    slab = place(slab, "b1", b1)
    slab = place(slab, "b2", b2)
    slab = place(slab, "bout", params["bout"])

    kernel = functools.partial(decoder_kernel, seq_len=seq_len,
                               latent=latent, emb=emb, hid=hid)
    vmem = pl.BlockSpec(memory_space=pltpu.MemorySpace.VMEM)

    out = pl.pallas_call(
        kernel,
        out_shape=jax.ShapeDtypeStruct((seq_len * B, lane), jnp.float32),
        in_specs=[vmem, vmem],
        out_specs=vmem,
    )(z, slab)

    # (seq_len*B, lane) t-major, lane-padded -> (B, seq_len, out_size).
    return out[:, :out_size].reshape(seq_len, B, out_size).swapaxes(0, 1)


def reference_forward(z, params, seq_len):
    """Pure-JAX reference of the same forward pass for validation
    (uses the original [i, f, g, o] gate order and unpacked weights)."""
    B = z.shape[0]
    E = params["whh1"].shape[0]
    H = params["whh2"].shape[0]

    def cell(x, h, c, wih, whh, b):
        gates = x @ wih + h @ whh + b
        hs = h.shape[-1]
        i = jax.nn.sigmoid(gates[:, :hs])
        f = jax.nn.sigmoid(gates[:, hs:2 * hs])
        g = jnp.tanh(gates[:, 2 * hs:3 * hs])
        o = jax.nn.sigmoid(gates[:, 3 * hs:])
        c = f * c + i * g
        h = o * jnp.tanh(c)
        return h, c

    h1 = jnp.zeros((B, E), jnp.float32)
    c1 = jnp.zeros((B, E), jnp.float32)
    h2 = jnp.zeros((B, H), jnp.float32)
    c2 = jnp.zeros((B, H), jnp.float32)
    outs = []
    for _ in range(seq_len):
        h1, c1 = cell(z, h1, c1, params["wih1"], params["whh1"], params["b1"])
        h2, c2 = cell(h1, h2, c2, params["wih2"], params["whh2"], params["b2"])
        outs.append(h2 @ params["wout"] + params["bout"])
    return jnp.stack(outs, axis=1)


if __name__ == "__main__":
    # Small shapes consistent with the module's constructor.
    seq_out = 8
    latent_dim = 8
    embedding_size = 16
    hidden_size = 2 * embedding_size
    output_size = 4
    B = 2

    key = jax.random.PRNGKey(0)
    ks = jax.random.split(key, 9)

    def u(k, shape, scale):
        return jax.random.uniform(k, shape, jnp.float32, -scale, scale)

    k1 = 1.0 / float(jnp.sqrt(jnp.float32(embedding_size)))
    k2 = 1.0 / float(jnp.sqrt(jnp.float32(hidden_size)))

    # Weights stored as (in_features, 4*hidden) i.e. transposed vs. PyTorch;
    # gate order [i, f, g, o]; b = b_ih + b_hh folded into one vector.
    params = {
        "wih1": u(ks[0], (latent_dim, 4 * embedding_size), k1),
        "whh1": u(ks[1], (embedding_size, 4 * embedding_size), k1),
        "b1":   u(ks[2], (1, 4 * embedding_size), k1),
        "wih2": u(ks[3], (embedding_size, 4 * hidden_size), k2),
        "whh2": u(ks[4], (hidden_size, 4 * hidden_size), k2),
        "b2":   u(ks[5], (1, 4 * hidden_size), k2),
        "wout": u(ks[6], (hidden_size, output_size), k2),
        "bout": u(ks[7], (1, output_size), k2),
    }

    z = jax.random.normal(ks[8], (B, latent_dim), jnp.float32)

    out = decoder_vaev_forward(z, params, seq_out)
    out = jax.block_until_ready(out)

    ref = reference_forward(z, params, seq_out)
    assert out.shape == (B, seq_out, output_size), out.shape
    assert jnp.allclose(out, ref, atol=1e-5, rtol=1e-5), \
        float(jnp.max(jnp.abs(out - ref)))

    print("KERNEL_OK")
</pallas_src>

<mosaic_0001>
module attributes {stable_mosaic.version = 11 : i64} {
  func.func @decoder_kernel(%arg0: memref<2x8xf32, #tpu.memory_space<vmem>>, %arg1: memref<128x128xf32, #tpu.memory_space<vmem>>, %arg2: memref<16x128xf32, #tpu.memory_space<vmem>>) attributes {dimension_semantics = [], scalar_prefetch = 0 : i64, scratch_operands = 0 : i64, tpu.core_type = #tpu.core_type<tc>} {
    %c0 = arith.constant 0 : index
    %c0_0 = arith.constant 0 : index
    %0 = vector.load %arg1[%c0, %c0_0] : memref<128x128xf32, #tpu.memory_space<vmem>>, vector<8x64xf32>
    %c8 = arith.constant 8 : index
    %c0_1 = arith.constant 0 : index
    %1 = vector.load %arg1[%c8, %c0_1] : memref<128x128xf32, #tpu.memory_space<vmem>>, vector<16x64xf32>
    %c24 = arith.constant 24 : index
    %c0_2 = arith.constant 0 : index
    %2 = vector.load %arg1[%c24, %c0_2] : memref<128x128xf32, #tpu.memory_space<vmem>>, vector<16x128xf32>
    %c40 = arith.constant 40 : index
    %c0_3 = arith.constant 0 : index
    %3 = vector.load %arg1[%c40, %c0_3] : memref<128x128xf32, #tpu.memory_space<vmem>>, vector<32x128xf32>
    %c72 = arith.constant 72 : index
    %c0_4 = arith.constant 0 : index
    %4 = vector.load %arg1[%c72, %c0_4] : memref<128x128xf32, #tpu.memory_space<vmem>>, vector<32x128xf32>
    %c104 = arith.constant 104 : index
    %c0_5 = arith.constant 0 : index
    %5 = vector.load %arg1[%c104, %c0_5] : memref<128x128xf32, #tpu.memory_space<vmem>>, vector<1x64xf32>
    %c112 = arith.constant 112 : index
    %c0_6 = arith.constant 0 : index
    %6 = vector.load %arg1[%c112, %c0_6] : memref<128x128xf32, #tpu.memory_space<vmem>>, vector<1x128xf32>
    %c120 = arith.constant 120 : index
    %c0_7 = arith.constant 0 : index
    %7 = vector.load %arg1[%c120, %c0_7] : memref<128x128xf32, #tpu.memory_space<vmem>>, vector<1x128xf32>
    %c0_8 = arith.constant 0 : index
    %c0_9 = arith.constant 0 : index
    %8 = vector.load %arg0[%c0_8, %c0_9] : memref<2x8xf32, #tpu.memory_space<vmem>>, vector<2x8xf32>
    %cst = arith.constant dense<0.000000e+00> : vector<2x64xf32>
    %9 = tpu.matmul %8, %0, %cst {dimension_numbers = #tpu.dot_dimension_numbers<[1], [0], [0], [1], [0, 0, 1, 1], [], []>} : vector<2x8xf32>, vector<8x64xf32>, vector<2x64xf32> -> vector<2x64xf32>
    %10 = vector.broadcast %5 : vector<1x64xf32> to vector<2x64xf32>
    %11 = arith.addf %9, %10 : vector<2x64xf32>
    %12 = vector.shape_cast %6 : vector<1x128xf32> to vector<1x128xf32>
    %13 = vector.broadcast %12 : vector<1x128xf32> to vector<2x128xf32>
    %cst_10 = arith.constant 0.000000e+00 : f32
    %14 = vector.broadcast %cst_10 : f32 to vector<2x16xf32>
    %cst_11 = arith.constant 0.000000e+00 : f32
    %15 = vector.broadcast %cst_11 : f32 to vector<2x16xf32>
    %cst_12 = arith.constant 0.000000e+00 : f32
    %16 = vector.broadcast %cst_12 : f32 to vector<2x32xf32>
    %cst_13 = arith.constant 0.000000e+00 : f32
    %17 = vector.broadcast %cst_13 : f32 to vector<2x32xf32>
    %cst_14 = arith.constant dense<0.000000e+00> : vector<2x64xf32>
    %18 = tpu.matmul %14, %1, %cst_14 {dimension_numbers = #tpu.dot_dimension_numbers<[1], [0], [0], [1], [0, 0, 1, 1], [], []>} : vector<2x16xf32>, vector<16x64xf32>, vector<2x64xf32> -> vector<2x64xf32>
    %19 = arith.addf %11, %18 : vector<2x64xf32>
    %20 = vector.extract_strided_slice %19 {offsets = [0, 0], sizes = [2, 48], strides = [1, 1]} : vector<2x64xf32> to vector<2x48xf32>
    %21 = arith.negf %20 : vector<2x48xf32>
    %22 = math.exp %21 : vector<2x48xf32>
    %cst_15 = arith.constant 1.000000e+00 : f32
    %23 = vector.broadcast %cst_15 : f32 to vector<2x48xf32>
    %24 = arith.addf %23, %22 : vector<2x48xf32>
    %25 = arith.divf %23, %24 : vector<2x48xf32>
    %26 = vector.extract_strided_slice %19 {offsets = [0, 48], sizes = [2, 16], strides = [1, 1]} : vector<2x64xf32> to vector<2x16xf32>
    %27 = math.tanh %26 : vector<2x16xf32>
    %28 = vector.extract_strided_slice %25 {offsets = [0, 0], sizes = [2, 16], strides = [1, 1]} : vector<2x48xf32> to vector<2x16xf32>
    %29 = vector.extract_strided_slice %25 {offsets = [0, 16], sizes = [2, 16], strides = [1, 1]} : vector<2x48xf32> to vector<2x16xf32>
    %30 = vector.extract_strided_slice %25 {offsets = [0, 32], sizes = [2, 16], strides = [1, 1]} : vector<2x48xf32> to vector<2x16xf32>
    %31 = arith.mulf %29, %15 : vector<2x16xf32>
    %32 = arith.mulf %28, %27 : vector<2x16xf32>
    %33 = arith.addf %31, %32 : vector<2x16xf32>
    %34 = math.tanh %33 : vector<2x16xf32>
    %35 = arith.mulf %30, %34 : vector<2x16xf32>
    %cst_16 = arith.constant dense<0.000000e+00> : vector<2x128xf32>
    %36 = tpu.matmul %35, %2, %cst_16 {dimension_numbers = #tpu.dot_dimension_numbers<[1], [0], [0], [1], [0, 0, 1, 1], [], []>} : vector<2x16xf32>, vector<16x128xf32>, vector<2x128xf32> -> vector<2x128xf32>
    %cst_17 = arith.constant dense<0.000000e+00> : vector<2x128xf32>
    %37 = tpu.matmul %16, %3, %cst_17 {dimension_numbers = #tpu.dot_dimension_numbers<[1], [0], [0], [1], [0, 0, 1, 1], [], []>} : vector<2x32xf32>, vector<32x128xf32>, vector<2x128xf32> -> vector<2x128xf32>
    %38 = arith.addf %36, %37 : vector<2x128xf32>
    %39 = arith.addf %38, %13 : vector<2x128xf32>
    %40 = vector.extract_strided_slice %39 {offsets = [0, 0], sizes = [2, 96], strides = [1, 1]} : vector<2x128xf32> to vector<2x96xf32>
    %41 = arith.negf %40 : vector<2x96xf32>
    %42 = math.exp %41 : vector<2x96xf32>
    %cst_18 = arith.constant 1.000000e+00 : f32
    %43 = vector.broadcast %cst_18 : f32 to vector<2x96xf32>
    %44 = arith.addf %43, %42 : vector<2x96xf32>
    %45 = arith.divf %43, %44 : vector<2x96xf32>
    %46 = vector.extract_strided_slice %39 {offsets = [0, 96], sizes = [2, 32], strides = [1, 1]} : vector<2x128xf32> to vector<2x32xf32>
    %47 = math.tanh %46 : vector<2x32xf32>
    %48 = vector.extract_strided_slice %45 {offsets = [0, 0], sizes = [2, 32], strides = [1, 1]} : vector<2x96xf32> to vector<2x32xf32>
    %49 = vector.extract_strided_slice %45 {offsets = [0, 32], sizes = [2, 32], strides = [1, 1]} : vector<2x96xf32> to vector<2x32xf32>
    %50 = vector.extract_strided_slice %45 {offsets = [0, 64], sizes = [2, 32], strides = [1, 1]} : vector<2x96xf32> to vector<2x32xf32>
    %51 = arith.mulf %49, %17 : vector<2x32xf32>
    %52 = arith.mulf %48, %47 : vector<2x32xf32>
    %53 = arith.addf %51, %52 : vector<2x32xf32>
    %54 = math.tanh %53 : vector<2x32xf32>
    %55 = arith.mulf %50, %54 : vector<2x32xf32>
    %cst_19 = arith.constant dense<0.000000e+00> : vector<2x64xf32>
    %56 = tpu.matmul %35, %1, %cst_19 {dimension_numbers = #tpu.dot_dimension_numbers<[1], [0], [0], [1], [0, 0, 1, 1], [], []>} : vector<2x16xf32>, vector<16x64xf32>, vector<2x64xf32> -> vector<2x64xf32>
    %57 = arith.addf %11, %56 : vector<2x64xf32>
    %58 = vector.extract_strided_slice %57 {offsets = [0, 0], sizes = [2, 48], strides = [1, 1]} : vector<2x64xf32> to vector<2x48xf32>
    %59 = arith.negf %58 : vector<2x48xf32>
    %60 = math.exp %59 : vector<2x48xf32>
    %cst_20 = arith.constant 1.000000e+00 : f32
    %61 = vector.broadcast %cst_20 : f32 to vector<2x48xf32>
    %62 = arith.addf %61, %60 : vector<2x48xf32>
    %63 = arith.divf %61, %62 : vector<2x48xf32>
    %64 = vector.extract_strided_slice %57 {offsets = [0, 48], sizes = [2, 16], strides = [1, 1]} : vector<2x64xf32> to vector<2x16xf32>
    %65 = math.tanh %64 : vector<2x16xf32>
    %66 = vector.extract_strided_slice %63 {offsets = [0, 0], sizes = [2, 16], strides = [1, 1]} : vector<2x48xf32> to vector<2x16xf32>
    %67 = vector.extract_strided_slice %63 {offsets = [0, 16], sizes = [2, 16], strides = [1, 1]} : vector<2x48xf32> to vector<2x16xf32>
    %68 = vector.extract_strided_slice %63 {offsets = [0, 32], sizes = [2, 16], strides = [1, 1]} : vector<2x48xf32> to vector<2x16xf32>
    %69 = arith.mulf %67, %33 : vector<2x16xf32>
    %70 = arith.mulf %66, %65 : vector<2x16xf32>
    %71 = arith.addf %69, %70 : vector<2x16xf32>
    %72 = math.tanh %71 : vector<2x16xf32>
    %73 = arith.mulf %68, %72 : vector<2x16xf32>
    %cst_21 = arith.constant dense<0.000000e+00> : vector<2x128xf32>
    %74 = tpu.matmul %73, %2, %cst_21 {dimension_numbers = #tpu.dot_dimension_numbers<[1], [0], [0], [1], [0, 0, 1, 1], [], []>} : vector<2x16xf32>, vector<16x128xf32>, vector<2x128xf32> -> vector<2x128xf32>
    %cst_22 = arith.constant dense<0.000000e+00> : vector<2x128xf32>
    %75 = tpu.matmul %55, %3, %cst_22 {dimension_numbers = #tpu.dot_dimension_numbers<[1], [0], [0], [1], [0, 0, 1, 1], [], []>} : vector<2x32xf32>, vector<32x128xf32>, vector<2x128xf32> -> vector<2x128xf32>
    %76 = arith.addf %74, %75 : vector<2x128xf32>
    %77 = arith.addf %76, %13 : vector<2x128xf32>
    %78 = vector.extract_strided_slice %77 {offsets = [0, 0], sizes = [2, 96], strides = [1, 1]} : vector<2x128xf32> to vector<2x96xf32>
    %79 = arith.negf %78 : vector<2x96xf32>
    %80 = math.exp %79 : vector<2x96xf32>
    %cst_23 = arith.constant 1.000000e+00 : f32
    %81 = vector.broadcast %cst_23 : f32 to vector<2x96xf32>
    %82 = arith.addf %81, %80 : vector<2x96xf32>
    %83 = arith.divf %81, %82 : vector<2x96xf32>
    %84 = vector.extract_strided_slice %77 {offsets = [0, 96], sizes = [2, 32], strides = [1, 1]} : vector<2x128xf32> to vector<2x32xf32>
    %85 = math.tanh %84 : vector<2x32xf32>
    %86 = vector.extract_strided_slice %83 {offsets = [0, 0], sizes = [2, 32], strides = [1, 1]} : vector<2x96xf32> to vector<2x32xf32>
    %87 = vector.extract_strided_slice %83 {offsets = [0, 32], sizes = [2, 32], strides = [1, 1]} : vector<2x96xf32> to vector<2x32xf32>
    %88 = vector.extract_strided_slice %83 {offsets = [0, 64], sizes = [2, 32], strides = [1, 1]} : vector<2x96xf32> to vector<2x32xf32>
    %89 = arith.mulf %87, %53 : vector<2x32xf32>
    %90 = arith.mulf %86, %85 : vector<2x32xf32>
    %91 = arith.addf %89, %90 : vector<2x32xf32>
    %92 = math.tanh %91 : vector<2x32xf32>
    %93 = arith.mulf %88, %92 : vector<2x32xf32>
    %cst_24 = arith.constant dense<0.000000e+00> : vector<2x64xf32>
    %94 = tpu.matmul %73, %1, %cst_24 {dimension_numbers = #tpu.dot_dimension_numbers<[1], [0], [0], [1], [0, 0, 1, 1], [], []>} : vector<2x16xf32>, vector<16x64xf32>, vector<2x64xf32> -> vector<2x64xf32>
    %95 = arith.addf %11, %94 : vector<2x64xf32>
    %96 = vector.extract_strided_slice %95 {offsets = [0, 0], sizes = [2, 48], strides = [1, 1]} : vector<2x64xf32> to vector<2x48xf32>
    %97 = arith.negf %96 : vector<2x48xf32>
    %98 = math.exp %97 : vector<2x48xf32>
    %cst_25 = arith.constant 1.000000e+00 : f32
    %99 = vector.broadcast %cst_25 : f32 to vector<2x48xf32>
    %100 = arith.addf %99, %98 : vector<2x48xf32>
    %101 = arith.divf %99, %100 : vector<2x48xf32>
    %102 = vector.extract_strided_slice %95 {offsets = [0, 48], sizes = [2, 16], strides = [1, 1]} : vector<2x64xf32> to vector<2x16xf32>
    %103 = math.tanh %102 : vector<2x16xf32>
    %104 = vector.extract_strided_slice %101 {offsets = [0, 0], sizes = [2, 16], strides = [1, 1]} : vector<2x48xf32> to vector<2x16xf32>
    %105 = vector.extract_strided_slice %101 {offsets = [0, 16], sizes = [2, 16], strides = [1, 1]} : vector<2x48xf32> to vector<2x16xf32>
    %106 = vector.extract_strided_slice %101 {offsets = [0, 32], sizes = [2, 16], strides = [1, 1]} : vector<2x48xf32> to vector<2x16xf32>
    %107 = arith.mulf %105, %71 : vector<2x16xf32>
    %108 = arith.mulf %104, %103 : vector<2x16xf32>
    %109 = arith.addf %107, %108 : vector<2x16xf32>
    %110 = math.tanh %109 : vector<2x16xf32>
    %111 = arith.mulf %106, %110 : vector<2x16xf32>
    %cst_26 = arith.constant dense<0.000000e+00> : vector<2x128xf32>
    %112 = tpu.matmul %111, %2, %cst_26 {dimension_numbers = #tpu.dot_dimension_numbers<[1], [0], [0], [1], [0, 0, 1, 1], [], []>} : vector<2x16xf32>, vector<16x128xf32>, vector<2x128xf32> -> vector<2x128xf32>
    %cst_27 = arith.constant dense<0.000000e+00> : vector<2x128xf32>
    %113 = tpu.matmul %93, %3, %cst_27 {dimension_numbers = #tpu.dot_dimension_numbers<[1], [0], [0], [1], [0, 0, 1, 1], [], []>} : vector<2x32xf32>, vector<32x128xf32>, vector<2x128xf32> -> vector<2x128xf32>
    %114 = arith.addf %112, %113 : vector<2x128xf32>
    %115 = arith.addf %114, %13 : vector<2x128xf32>
    %116 = vector.extract_strided_slice %115 {offsets = [0, 0], sizes = [2, 96], strides = [1, 1]} : vector<2x128xf32> to vector<2x96xf32>
    %117 = arith.negf %116 : vector<2x96xf32>
    %118 = math.exp %117 : vector<2x96xf32>
    %cst_28 = arith.constant 1.000000e+00 : f32
    %119 = vector.broadcast %cst_28 : f32 to vector<2x96xf32>
    %120 = arith.addf %119, %118 : vector<2x96xf32>
    %121 = arith.divf %119, %120 : vector<2x96xf32>
    %122 = vector.extract_strided_slice %115 {offsets = [0, 96], sizes = [2, 32], strides = [1, 1]} : vector<2x128xf32> to vector<2x32xf32>
    %123 = math.tanh %122 : vector<2x32xf32>
    %124 = vector.extract_strided_slice %121 {offsets = [0, 0], sizes = [2, 32], strides = [1, 1]} : vector<2x96xf32> to vector<2x32xf32>
    %125 = vector.extract_strided_slice %121 {offsets = [0, 32], sizes = [2, 32], strides = [1, 1]} : vector<2x96xf32> to vector<2x32xf32>
    %126 = vector.extract_strided_slice %121 {offsets = [0, 64], sizes = [2, 32], strides = [1, 1]} : vector<2x96xf32> to vector<2x32xf32>
    %127 = arith.mulf %125, %91 : vector<2x32xf32>
    %128 = arith.mulf %124, %123 : vector<2x32xf32>
    %129 = arith.addf %127, %128 : vector<2x32xf32>
    %130 = math.tanh %129 : vector<2x32xf32>
    %131 = arith.mulf %126, %130 : vector<2x32xf32>
    %cst_29 = arith.constant dense<0.000000e+00> : vector<2x64xf32>
    %132 = tpu.matmul %111, %1, %cst_29 {dimension_numbers = #tpu.dot_dimension_numbers<[1], [0], [0], [1], [0, 0, 1, 1], [], []>} : vector<2x16xf32>, vector<16x64xf32>, vector<2x64xf32> -> vector<2x64xf32>
    %133 = arith.addf %11, %132 : vector<2x64xf32>
    %134 = vector.extract_strided_slice %133 {offsets = [0, 0], sizes = [2, 48], strides = [1, 1]} : vector<2x64xf32> to vector<2x48xf32>
    %135 = arith.negf %134 : vector<2x48xf32>
    %136 = math.exp %135 : vector<2x48xf32>
    %cst_30 = arith.constant 1.000000e+00 : f32
    %137 = vector.broadcast %cst_30 : f32 to vector<2x48xf32>
    %138 = arith.addf %137, %136 : vector<2x48xf32>
    %139 = arith.divf %137, %138 : vector<2x48xf32>
    %140 = vector.extract_strided_slice %133 {offsets = [0, 48], sizes = [2, 16], strides = [1, 1]} : vector<2x64xf32> to vector<2x16xf32>
    %141 = math.tanh %140 : vector<2x16xf32>
    %142 = vector.extract_strided_slice %139 {offsets = [0, 0], sizes = [2, 16], strides = [1, 1]} : vector<2x48xf32> to vector<2x16xf32>
    %143 = vector.extract_strided_slice %139 {offsets = [0, 16], sizes = [2, 16], strides = [1, 1]} : vector<2x48xf32> to vector<2x16xf32>
    %144 = vector.extract_strided_slice %139 {offsets = [0, 32], sizes = [2, 16], strides = [1, 1]} : vector<2x48xf32> to vector<2x16xf32>
    %145 = arith.mulf %143, %109 : vector<2x16xf32>
    %146 = arith.mulf %142, %141 : vector<2x16xf32>
    %147 = arith.addf %145, %146 : vector<2x16xf32>
    %148 = math.tanh %147 : vector<2x16xf32>
    %149 = arith.mulf %144, %148 : vector<2x16xf32>
    %cst_31 = arith.constant dense<0.000000e+00> : vector<2x128xf32>
    %150 = tpu.matmul %149, %2, %cst_31 {dimension_numbers = #tpu.dot_dimension_numbers<[1], [0], [0], [1], [0, 0, 1, 1], [], []>} : vector<2x16xf32>, vector<16x128xf32>, vector<2x128xf32> -> vector<2x128xf32>
    %cst_32 = arith.constant dense<0.000000e+00> : vector<2x128xf32>
    %151 = tpu.matmul %131, %3, %cst_32 {dimension_numbers = #tpu.dot_dimension_numbers<[1], [0], [0], [1], [0, 0, 1, 1], [], []>} : vector<2x32xf32>, vector<32x128xf32>, vector<2x128xf32> -> vector<2x128xf32>
    %152 = arith.addf %150, %151 : vector<2x128xf32>
    %153 = arith.addf %152, %13 : vector<2x128xf32>
    %154 = vector.extract_strided_slice %153 {offsets = [0, 0], sizes = [2, 96], strides = [1, 1]} : vector<2x128xf32> to vector<2x96xf32>
    %155 = arith.negf %154 : vector<2x96xf32>
    %156 = math.exp %155 : vector<2x96xf32>
    %cst_33 = arith.constant 1.000000e+00 : f32
    %157 = vector.broadcast %cst_33 : f32 to vector<2x96xf32>
    %158 = arith.addf %157, %156 : vector<2x96xf32>
    %159 = arith.divf %157, %158 : vector<2x96xf32>
    %160 = vector.extract_strided_slice %153 {offsets = [0, 96], sizes = [2, 32], strides = [1, 1]} : vector<2x128xf32> to vector<2x32xf32>
    %161 = math.tanh %160 : vector<2x32xf32>
    %162 = vector.extract_strided_slice %159 {offsets = [0, 0], sizes = [2, 32], strides = [1, 1]} : vector<2x96xf32> to vector<2x32xf32>
    %163 = vector.extract_strided_slice %159 {offsets = [0, 32], sizes = [2, 32], strides = [1, 1]} : vector<2x96xf32> to vector<2x32xf32>
    %164 = vector.extract_strided_slice %159 {offsets = [0, 64], sizes = [2, 32], strides = [1, 1]} : vector<2x96xf32> to vector<2x32xf32>
    %165 = arith.mulf %163, %129 : vector<2x32xf32>
    %166 = arith.mulf %162, %161 : vector<2x32xf32>
    %167 = arith.addf %165, %166 : vector<2x32xf32>
    %168 = math.tanh %167 : vector<2x32xf32>
    %169 = arith.mulf %164, %168 : vector<2x32xf32>
    %cst_34 = arith.constant dense<0.000000e+00> : vector<2x64xf32>
    %170 = tpu.matmul %149, %1, %cst_34 {dimension_numbers = #tpu.dot_dimension_numbers<[1], [0], [0], [1], [0, 0, 1, 1], [], []>} : vector<2x16xf32>, vector<16x64xf32>, vector<2x64xf32> -> vector<2x64xf32>
    %171 = arith.addf %11, %170 : vector<2x64xf32>
    %172 = vector.extract_strided_slice %171 {offsets = [0, 0], sizes = [2, 48], strides = [1, 1]} : vector<2x64xf32> to vector<2x48xf32>
    %173 = arith.negf %172 : vector<2x48xf32>
    %174 = math.exp %173 : vector<2x48xf32>
    %cst_35 = arith.constant 1.000000e+00 : f32
    %175 = vector.broadcast %cst_35 : f32 to vector<2x48xf32>
    %176 = arith.addf %175, %174 : vector<2x48xf32>
    %177 = arith.divf %175, %176 : vector<2x48xf32>
    %178 = vector.extract_strided_slice %171 {offsets = [0, 48], sizes = [2, 16], strides = [1, 1]} : vector<2x64xf32> to vector<2x16xf32>
    %179 = math.tanh %178 : vector<2x16xf32>
    %180 = vector.extract_strided_slice %177 {offsets = [0, 0], sizes = [2, 16], strides = [1, 1]} : vector<2x48xf32> to vector<2x16xf32>
    %181 = vector.extract_strided_slice %177 {offsets = [0, 16], sizes = [2, 16], strides = [1, 1]} : vector<2x48xf32> to vector<2x16xf32>
    %182 = vector.extract_strided_slice %177 {offsets = [0, 32], sizes = [2, 16], strides = [1, 1]} : vector<2x48xf32> to vector<2x16xf32>
    %183 = arith.mulf %181, %147 : vector<2x16xf32>
    %184 = arith.mulf %180, %179 : vector<2x16xf32>
    %185 = arith.addf %183, %184 : vector<2x16xf32>
    %186 = math.tanh %185 : vector<2x16xf32>
    %187 = arith.mulf %182, %186 : vector<2x16xf32>
    %cst_36 = arith.constant dense<0.000000e+00> : vector<2x128xf32>
    %188 = tpu.matmul %187, %2, %cst_36 {dimension_numbers = #tpu.dot_dimension_numbers<[1], [0], [0], [1], [0, 0, 1, 1], [], []>} : vector<2x16xf32>, vector<16x128xf32>, vector<2x128xf32> -> vector<2x128xf32>
    %cst_37 = arith.constant dense<0.000000e+00> : vector<2x128xf32>
    %189 = tpu.matmul %169, %3, %cst_37 {dimension_numbers = #tpu.dot_dimension_numbers<[1], [0], [0], [1], [0, 0, 1, 1], [], []>} : vector<2x32xf32>, vector<32x128xf32>, vector<2x128xf32> -> vector<2x128xf32>
    %190 = arith.addf %188, %189 : vector<2x128xf32>
    %191 = arith.addf %190, %13 : vector<2x128xf32>
    %192 = vector.extract_strided_slice %191 {offsets = [0, 0], sizes = [2, 96], strides = [1, 1]} : vector<2x128xf32> to vector<2x96xf32>
    %193 = arith.negf %192 : vector<2x96xf32>
    %194 = math.exp %193 : vector<2x96xf32>
    %cst_38 = arith.constant 1.000000e+00 : f32
    %195 = vector.broadcast %cst_38 : f32 to vector<2x96xf32>
    %196 = arith.addf %195, %194 : vector<2x96xf32>
    %197 = arith.divf %195, %196 : vector<2x96xf32>
    %198 = vector.extract_strided_slice %191 {offsets = [0, 96], sizes = [2, 32], strides = [1, 1]} : vector<2x128xf32> to vector<2x32xf32>
    %199 = math.tanh %198 : vector<2x32xf32>
    %200 = vector.extract_strided_slice %197 {offsets = [0, 0], sizes = [2, 32], strides = [1, 1]} : vector<2x96xf32> to vector<2x32xf32>
    %201 = vector.extract_strided_slice %197 {offsets = [0, 32], sizes = [2, 32], strides = [1, 1]} : vector<2x96xf32> to vector<2x32xf32>
    %202 = vector.extract_strided_slice %197 {offsets = [0, 64], sizes = [2, 32], strides = [1, 1]} : vector<2x96xf32> to vector<2x32xf32>
    %203 = arith.mulf %201, %167 : vector<2x32xf32>
    %204 = arith.mulf %200, %199 : vector<2x32xf32>
    %205 = arith.addf %203, %204 : vector<2x32xf32>
    %206 = math.tanh %205 : vector<2x32xf32>
    %207 = arith.mulf %202, %206 : vector<2x32xf32>
    %cst_39 = arith.constant dense<0.000000e+00> : vector<2x64xf32>
    %208 = tpu.matmul %187, %1, %cst_39 {dimension_numbers = #tpu.dot_dimension_numbers<[1], [0], [0], [1], [0, 0, 1, 1], [], []>} : vector<2x16xf32>, vector<16x64xf32>, vector<2x64xf32> -> vector<2x64xf32>
    %209 = arith.addf %11, %208 : vector<2x64xf32>
    %210 = vector.extract_strided_slice %209 {offsets = [0, 0], sizes = [2, 48], strides = [1, 1]} : vector<2x64xf32> to vector<2x48xf32>
    %211 = arith.negf %210 : vector<2x48xf32>
    %212 = math.exp %211 : vector<2x48xf32>
    %cst_40 = arith.constant 1.000000e+00 : f32
    %213 = vector.broadcast %cst_40 : f32 to vector<2x48xf32>
    %214 = arith.addf %213, %212 : vector<2x48xf32>
    %215 = arith.divf %213, %214 : vector<2x48xf32>
    %216 = vector.extract_strided_slice %209 {offsets = [0, 48], sizes = [2, 16], strides = [1, 1]} : vector<2x64xf32> to vector<2x16xf32>
    %217 = math.tanh %216 : vector<2x16xf32>
    %218 = vector.extract_strided_slice %215 {offsets = [0, 0], sizes = [2, 16], strides = [1, 1]} : vector<2x48xf32> to vector<2x16xf32>
    %219 = vector.extract_strided_slice %215 {offsets = [0, 16], sizes = [2, 16], strides = [1, 1]} : vector<2x48xf32> to vector<2x16xf32>
    %220 = vector.extract_strided_slice %215 {offsets = [0, 32], sizes = [2, 16], strides = [1, 1]} : vector<2x48xf32> to vector<2x16xf32>
    %221 = arith.mulf %219, %185 : vector<2x16xf32>
    %222 = arith.mulf %218, %217 : vector<2x16xf32>
    %223 = arith.addf %221, %222 : vector<2x16xf32>
    %224 = math.tanh %223 : vector<2x16xf32>
    %225 = arith.mulf %220, %224 : vector<2x16xf32>
    %cst_41 = arith.constant dense<0.000000e+00> : vector<2x128xf32>
    %226 = tpu.matmul %225, %2, %cst_41 {dimension_numbers = #tpu.dot_dimension_numbers<[1], [0], [0], [1], [0, 0, 1, 1], [], []>} : vector<2x16xf32>, vector<16x128xf32>, vector<2x128xf32> -> vector<2x128xf32>
    %cst_42 = arith.constant dense<0.000000e+00> : vector<2x128xf32>
    %227 = tpu.matmul %207, %3, %cst_42 {dimension_numbers = #tpu.dot_dimension_numbers<[1], [0], [0], [1], [0, 0, 1, 1], [], []>} : vector<2x32xf32>, vector<32x128xf32>, vector<2x128xf32> -> vector<2x128xf32>
    %228 = arith.addf %226, %227 : vector<2x128xf32>
    %229 = arith.addf %228, %13 : vector<2x128xf32>
    %230 = vector.extract_strided_slice %229 {offsets = [0, 0], sizes = [2, 96], strides = [1, 1]} : vector<2x128xf32> to vector<2x96xf32>
    %231 = arith.negf %230 : vector<2x96xf32>
    %232 = math.exp %231 : vector<2x96xf32>
    %cst_43 = arith.constant 1.000000e+00 : f32
    %233 = vector.broadcast %cst_43 : f32 to vector<2x96xf32>
    %234 = arith.addf %233, %232 : vector<2x96xf32>
    %235 = arith.divf %233, %234 : vector<2x96xf32>
    %236 = vector.extract_strided_slice %229 {offsets = [0, 96], sizes = [2, 32], strides = [1, 1]} : vector<2x128xf32> to vector<2x32xf32>
    %237 = math.tanh %236 : vector<2x32xf32>
    %238 = vector.extract_strided_slice %235 {offsets = [0, 0], sizes = [2, 32], strides = [1, 1]} : vector<2x96xf32> to vector<2x32xf32>
    %239 = vector.extract_strided_slice %235 {offsets = [0, 32], sizes = [2, 32], strides = [1, 1]} : vector<2x96xf32> to vector<2x32xf32>
    %240 = vector.extract_strided_slice %235 {offsets = [0, 64], sizes = [2, 32], strides = [1, 1]} : vector<2x96xf32> to vector<2x32xf32>
    %241 = arith.mulf %239, %205 : vector<2x32xf32>
    %242 = arith.mulf %238, %237 : vector<2x32xf32>
    %243 = arith.addf %241, %242 : vector<2x32xf32>
    %244 = math.tanh %243 : vector<2x32xf32>
    %245 = arith.mulf %240, %244 : vector<2x32xf32>
    %cst_44 = arith.constant dense<0.000000e+00> : vector<2x64xf32>
    %246 = tpu.matmul %225, %1, %cst_44 {dimension_numbers = #tpu.dot_dimension_numbers<[1], [0], [0], [1], [0, 0, 1, 1], [], []>} : vector<2x16xf32>, vector<16x64xf32>, vector<2x64xf32> -> vector<2x64xf32>
    %247 = arith.addf %11, %246 : vector<2x64xf32>
    %248 = vector.extract_strided_slice %247 {offsets = [0, 0], sizes = [2, 48], strides = [1, 1]} : vector<2x64xf32> to vector<2x48xf32>
    %249 = arith.negf %248 : vector<2x48xf32>
    %250 = math.exp %249 : vector<2x48xf32>
    %cst_45 = arith.constant 1.000000e+00 : f32
    %251 = vector.broadcast %cst_45 : f32 to vector<2x48xf32>
    %252 = arith.addf %251, %250 : vector<2x48xf32>
    %253 = arith.divf %251, %252 : vector<2x48xf32>
    %254 = vector.extract_strided_slice %247 {offsets = [0, 48], sizes = [2, 16], strides = [1, 1]} : vector<2x64xf32> to vector<2x16xf32>
    %255 = math.tanh %254 : vector<2x16xf32>
    %256 = vector.extract_strided_slice %253 {offsets = [0, 0], sizes = [2, 16], strides = [1, 1]} : vector<2x48xf32> to vector<2x16xf32>
    %257 = vector.extract_strided_slice %253 {offsets = [0, 16], sizes = [2, 16], strides = [1, 1]} : vector<2x48xf32> to vector<2x16xf32>
    %258 = vector.extract_strided_slice %253 {offsets = [0, 32], sizes = [2, 16], strides = [1, 1]} : vector<2x48xf32> to vector<2x16xf32>
    %259 = arith.mulf %257, %223 : vector<2x16xf32>
    %260 = arith.mulf %256, %255 : vector<2x16xf32>
    %261 = arith.addf %259, %260 : vector<2x16xf32>
    %262 = math.tanh %261 : vector<2x16xf32>
    %263 = arith.mulf %258, %262 : vector<2x16xf32>
    %cst_46 = arith.constant dense<0.000000e+00> : vector<2x128xf32>
    %264 = tpu.matmul %263, %2, %cst_46 {dimension_numbers = #tpu.dot_dimension_numbers<[1], [0], [0], [1], [0, 0, 1, 1], [], []>} : vector<2x16xf32>, vector<16x128xf32>, vector<2x128xf32> -> vector<2x128xf32>
    %cst_47 = arith.constant dense<0.000000e+00> : vector<2x128xf32>
    %265 = tpu.matmul %245, %3, %cst_47 {dimension_numbers = #tpu.dot_dimension_numbers<[1], [0], [0], [1], [0, 0, 1, 1], [], []>} : vector<2x32xf32>, vector<32x128xf32>, vector<2x128xf32> -> vector<2x128xf32>
    %266 = arith.addf %264, %265 : vector<2x128xf32>
    %267 = arith.addf %266, %13 : vector<2x128xf32>
    %268 = vector.extract_strided_slice %267 {offsets = [0, 0], sizes = [2, 96], strides = [1, 1]} : vector<2x128xf32> to vector<2x96xf32>
    %269 = arith.negf %268 : vector<2x96xf32>
    %270 = math.exp %269 : vector<2x96xf32>
    %cst_48 = arith.constant 1.000000e+00 : f32
    %271 = vector.broadcast %cst_48 : f32 to vector<2x96xf32>
    %272 = arith.addf %271, %270 : vector<2x96xf32>
    %273 = arith.divf %271, %272 : vector<2x96xf32>
    %274 = vector.extract_strided_slice %267 {offsets = [0, 96], sizes = [2, 32], strides = [1, 1]} : vector<2x128xf32> to vector<2x32xf32>
    %275 = math.tanh %274 : vector<2x32xf32>
    %276 = vector.extract_strided_slice %273 {offsets = [0, 0], sizes = [2, 32], strides = [1, 1]} : vector<2x96xf32> to vector<2x32xf32>
    %277 = vector.extract_strided_slice %273 {offsets = [0, 32], sizes = [2, 32], strides = [1, 1]} : vector<2x96xf32> to vector<2x32xf32>
    %278 = vector.extract_strided_slice %273 {offsets = [0, 64], sizes = [2, 32], strides = [1, 1]} : vector<2x96xf32> to vector<2x32xf32>
    %279 = arith.mulf %277, %243 : vector<2x32xf32>
    %280 = arith.mulf %276, %275 : vector<2x32xf32>
    %281 = arith.addf %279, %280 : vector<2x32xf32>
    %282 = math.tanh %281 : vector<2x32xf32>
    %283 = arith.mulf %278, %282 : vector<2x32xf32>
    %cst_49 = arith.constant dense<0.000000e+00> : vector<2x64xf32>
    %284 = tpu.matmul %263, %1, %cst_49 {dimension_numbers = #tpu.dot_dimension_numbers<[1], [0], [0], [1], [0, 0, 1, 1], [], []>} : vector<2x16xf32>, vector<16x64xf32>, vector<2x64xf32> -> vector<2x64xf32>
    %285 = arith.addf %11, %284 : vector<2x64xf32>
    %286 = vector.extract_strided_slice %285 {offsets = [0, 0], sizes = [2, 48], strides = [1, 1]} : vector<2x64xf32> to vector<2x48xf32>
    %287 = arith.negf %286 : vector<2x48xf32>
    %288 = math.exp %287 : vector<2x48xf32>
    %cst_50 = arith.constant 1.000000e+00 : f32
    %289 = vector.broadcast %cst_50 : f32 to vector<2x48xf32>
    %290 = arith.addf %289, %288 : vector<2x48xf32>
    %291 = arith.divf %289, %290 : vector<2x48xf32>
    %292 = vector.extract_strided_slice %285 {offsets = [0, 48], sizes = [2, 16], strides = [1, 1]} : vector<2x64xf32> to vector<2x16xf32>
    %293 = math.tanh %292 : vector<2x16xf32>
    %294 = vector.extract_strided_slice %291 {offsets = [0, 0], sizes = [2, 16], strides = [1, 1]} : vector<2x48xf32> to vector<2x16xf32>
    %295 = vector.extract_strided_slice %291 {offsets = [0, 16], sizes = [2, 16], strides = [1, 1]} : vector<2x48xf32> to vector<2x16xf32>
    %296 = vector.extract_strided_slice %291 {offsets = [0, 32], sizes = [2, 16], strides = [1, 1]} : vector<2x48xf32> to vector<2x16xf32>
    %297 = arith.mulf %295, %261 : vector<2x16xf32>
    %298 = arith.mulf %294, %293 : vector<2x16xf32>
    %299 = arith.addf %297, %298 : vector<2x16xf32>
    %300 = math.tanh %299 : vector<2x16xf32>
    %301 = arith.mulf %296, %300 : vector<2x16xf32>
    %cst_51 = arith.constant dense<0.000000e+00> : vector<2x128xf32>
    %302 = tpu.matmul %301, %2, %cst_51 {dimension_numbers = #tpu.dot_dimension_numbers<[1], [0], [0], [1], [0, 0, 1, 1], [], []>} : vector<2x16xf32>, vector<16x128xf32>, vector<2x128xf32> -> vector<2x128xf32>
    %cst_52 = arith.constant dense<0.000000e+00> : vector<2x128xf32>
    %303 = tpu.matmul %283, %3, %cst_52 {dimension_numbers = #tpu.dot_dimension_numbers<[1], [0], [0], [1], [0, 0, 1, 1], [], []>} : vector<2x32xf32>, vector<32x128xf32>, vector<2x128xf32> -> vector<2x128xf32>
    %304 = arith.addf %302, %303 : vector<2x128xf32>
    %305 = arith.addf %304, %13 : vector<2x128xf32>
    %306 = vector.extract_strided_slice %305 {offsets = [0, 0], sizes = [2, 96], strides = [1, 1]} : vector<2x128xf32> to vector<2x96xf32>
    %307 = arith.negf %306 : vector<2x96xf32>
    %308 = math.exp %307 : vector<2x96xf32>
    %cst_53 = arith.constant 1.000000e+00 : f32
    %309 = vector.broadcast %cst_53 : f32 to vector<2x96xf32>
    %310 = arith.addf %309, %308 : vector<2x96xf32>
    %311 = arith.divf %309, %310 : vector<2x96xf32>
    %312 = vector.extract_strided_slice %305 {offsets = [0, 96], sizes = [2, 32], strides = [1, 1]} : vector<2x128xf32> to vector<2x32xf32>
    %313 = math.tanh %312 : vector<2x32xf32>
    %314 = vector.extract_strided_slice %311 {offsets = [0, 0], sizes = [2, 32], strides = [1, 1]} : vector<2x96xf32> to vector<2x32xf32>
    %315 = vector.extract_strided_slice %311 {offsets = [0, 32], sizes = [2, 32], strides = [1, 1]} : vector<2x96xf32> to vector<2x32xf32>
    %316 = vector.extract_strided_slice %311 {offsets = [0, 64], sizes = [2, 32], strides = [1, 1]} : vector<2x96xf32> to vector<2x32xf32>
    %317 = arith.mulf %315, %281 : vector<2x32xf32>
    %318 = arith.mulf %314, %313 : vector<2x32xf32>
    %319 = arith.addf %317, %318 : vector<2x32xf32>
    %320 = math.tanh %319 : vector<2x32xf32>
    %321 = arith.mulf %316, %320 : vector<2x32xf32>
    %322 = tpu.concatenate %55, %93, %131, %169, %207, %245, %283, %321 in 0 : vector<2x32xf32>, vector<2x32xf32>, vector<2x32xf32>, vector<2x32xf32>, vector<2x32xf32>, vector<2x32xf32>, vector<2x32xf32>, vector<2x32xf32> -> vector<16x32xf32>
    %cst_54 = arith.constant dense<0.000000e+00> : vector<16x128xf32>
    %323 = tpu.matmul %322, %4, %cst_54 {dimension_numbers = #tpu.dot_dimension_numbers<[1], [0], [0], [1], [0, 0, 1, 1], [], []>} : vector<16x32xf32>, vector<32x128xf32>, vector<16x128xf32> -> vector<16x128xf32>
    %324 = vector.broadcast %7 : vector<1x128xf32> to vector<16x128xf32>
    %325 = arith.addf %323, %324 : vector<16x128xf32>
    %c0_55 = arith.constant 0 : index
    %c0_56 = arith.constant 0 : index
    %326 = vector.load %arg2[%c0_55, %c0_56] : memref<16x128xf32, #tpu.memory_space<vmem>>, vector<16x128xf32>
    tpu.vector_store %arg2[%c0_55, %c0_56], %325 {strides = array<i32>} : memref<16x128xf32, #tpu.memory_space<vmem>>, vector<16x128xf32>,
    return
  }
}

</mosaic_0001>

<llo_original>
// kernel: tpu_custom_call.1
$region0: #{tpu_custom_call.1}
  #allocation0 [shape = 'u32[]', space=smem, size = 0x4, offset = 0x4, fixed_abs, tag = 'smem constant byte address 0x4 - core index']
  #allocation1 [shape = 'u32[144,128]{1,0:T(1,128)}', space=vmem, size = 0x12000, scoped, tag = 'internal scratch']
  %s0 = inlined_call_operand.hbm [shape: f32[2,8], index: 0, kind: input, shape index: {}]
  %s1 = inlined_call_operand.hbm [shape: f32[128,128], index: 1, kind: input, shape index: {}]
  %s2 = inlined_call_operand.hbm [shape: f32[16,128], index: 2, kind: output, shape index: {}]
  %s3 = sld [smem:[#allocation0]]
  $region26: #{tpu_custom_call.1} parent=0
    _
  %s5 = ssub.s32 1, %s3
  %s6 = scalar_select 0, %s5, %s3
  $region1: #{tpu_custom_call.1} parent=0
    #allocation2 [shape = 'u8[1024]{0}', space=vmem, size = 0x400, scoped, tag = 'input window, operand 0, single buffered']
    #allocation3 [shape = 's32[1]{0}', space=sflag, size = 0x4, scoped, tag = 'scoped memory for tpu_custom_call.1']
    #allocation4 [shape = 's32[1]{0}', space=sflag, size = 0x4, scoped, tag = 'scoped memory for tpu_custom_call.1']
    #allocation5 [shape = 'u8[65536]{0}', space=vmem, size = 0x10000, scoped, tag = 'input window, operand 1, single buffered']
    #allocation6 [shape = 's32[1]{0}', space=sflag, size = 0x4, scoped, tag = 'scoped memory for tpu_custom_call.1']
    #allocation7 [shape = 'u8[8192]{0}', space=vmem, size = 0x2000, scoped, tag = 'output window, operand 0, single buffered']
    %7 = vsyncpa [#allocation3], 0
    %8 = vsyncpa [#allocation6], 0
    %9 = vsyncpa [#allocation4], 0
    // Predicated region
    $region2: #{tpu_custom_call.1} parent=1 // pred_check
      _
    $region3: #{tpu_custom_call.1} parent=1 // pred_check_branch
      %11 = sbr.rel (0) target = $region5
    $region4: #{tpu_custom_call.1} parent=1 // pred_region
      %s13 = ssub.s32 32, 32
      %14 = vsyncadd [#allocation3], %s13
      %s16 = sshll.u32 [#allocation2], 4
      %s17 = int_to_ptr.vmem [resolvable:$true] %s16
      %19 = dma.hbm_to_vmem [thread:$0]  %s0, 32, %s17, [#allocation3]
    $region5: #{tpu_custom_call.1} parent=1 // pred_fallthru
      _
    // Predicated region
    $region6: #{tpu_custom_call.1} parent=1 // pred_check
      _
    $region7: #{tpu_custom_call.1} parent=1 // pred_check_branch
      %21 = sbr.rel (0) target = $region9
    $region8: #{tpu_custom_call.1} parent=1 // pred_region
      %s23 = ssub.s32 2048, 2048
      %24 = vsyncadd [#allocation6], %s23
      %s25 = sshll.u32 [#allocation5], 4
      %s26 = int_to_ptr.vmem [resolvable:$true] %s25
      %31 = dma.hbm_to_vmem [thread:$0]  %s1, 2048, %s26, [#allocation6], 128, 128, 8
    $region9: #{tpu_custom_call.1} parent=1 // pred_fallthru
      _
    // Predicated region
    $region10: #{tpu_custom_call.1} parent=1 // pred_check
      _
    $region11: #{tpu_custom_call.1} parent=1 // pred_check_branch
      %33 = sbr.rel (0) target = $region13
    $region12: #{tpu_custom_call.1} parent=1 // pred_region
      %34 = dma.done [#allocation3], 32
    $region13: #{tpu_custom_call.1} parent=1 // pred_fallthru
      _
    // Predicated region
    $region14: #{tpu_custom_call.1} parent=1 // pred_check
      _
    $region15: #{tpu_custom_call.1} parent=1 // pred_check_branch
      %36 = sbr.rel (0) target = $region17
    $region16: #{tpu_custom_call.1} parent=1 // pred_region
      %37 = dma.done [#allocation6], 2048
    $region17: #{tpu_custom_call.1} parent=1 // pred_fallthru
      _
    %v38 = vld [vmem:[#allocation5] sm:$0xff]
    %v39 = vld [vmem:[#allocation5 + $0x8] sm:$0xff]
    %v40 = vld [vmem:[#allocation5 + $0x10] sm:$0xff]
    %v41 = vld [vmem:[#allocation5 + $0x18] sm:$0xff]
    %v42 = vld [vmem:[#allocation5 + $0x20] sm:$0xff]
    %v43 = vld [vmem:[#allocation5 + $0x28] sm:$0xff]
    %v44 = vld [vmem:[#allocation5 + $0x30] sm:$0xff]
    %v45 = vld [vmem:[#allocation5 + $0x38] sm:$0xff]
    %v46 = vld [vmem:[#allocation5 + $0x40] sm:$0xff]
    %v47 = vld [vmem:[#allocation5 + $0x48] sm:$0xff]
    %v48 = vld [vmem:[#allocation5 + $0x50] sm:$0xff]
    %v49 = vld [vmem:[#allocation5 + $0x58] sm:$0xff]
    %v50 = vld [vmem:[#allocation5 + $0x60] sm:$0xff]
    %v51 = vld [vmem:[#allocation5 + $0x68] sm:$0x1]
    %v52 = vld [vmem:[#allocation5 + $0x70] sm:$0x1]
    %v53 = vld [vmem:[#allocation5 + $0x78] sm:$0x1]
    %v54 = vld [vmem:[#allocation2] sm:$0x3]
    %v55 = vlaneseq
    %v56 = vshrl.u32 %v55, 7
    %v57 = vsub.s32 0, %v56
    %v58 = vrot.slane %v51, %v57
    %vm59 = vcmask 64512
    %v61 = vsel %vm59, %v54, 0
    %63 = vmatprep.subr.mxu0 0.0
    %64 = vmatpush1.msra.mxu0 0.0
    %65 = vmatprep.subr.mxu0 0.0
    %66 = vmatpush1.msra.mxu0 0.0
    %67 = vmatprep.subr.mxu0 0.0
    %68 = vmatpush1.msra.mxu0 0.0
    %69 = vmatprep.subr.mxu0 0.0
    %70 = vmatpush1.msra.mxu0 0.0
    %71 = vmatprep.subr.mxu0 0.0
    %72 = vmatpush1.msra.mxu0 0.0
    %73 = vmatprep.subr.mxu0 0.0
    %74 = vmatpush1.msra.mxu0 0.0
    %75 = vmatprep.subr.mxu0 0.0
    %76 = vmatpush1.msra.mxu0 0.0
    %77 = vmatprep.subr.mxu0 0.0
    %78 = vmatpush1.msra.mxu0 0.0
    %79 = vmatprep.subr.mxu0 0.0
    %80 = vmatpush1.msra.mxu0 0.0
    %81 = vmatprep.subr.mxu0 0.0
    %82 = vmatpush1.msra.mxu0 0.0
    %83 = vmatprep.subr.mxu0 0.0
    %84 = vmatpush1.msra.mxu0 0.0
    %85 = vmatprep.subr.mxu0 0.0
    %86 = vmatpush1.msra.mxu0 0.0
    %87 = vmatprep.subr.mxu0 0.0
    %88 = vmatpush1.msra.mxu0 0.0
    %89 = vmatprep.subr.mxu0 0.0
    %90 = vmatpush1.msra.mxu0 0.0
    %91 = vmatprep.subr.mxu0 0.0
    %92 = vmatpush1.msra.mxu0 0.0
    %93 = vmatprep.subr.mxu0 0.0
    %94 = vmatpush1.msra.mxu0 %v38
    %95 = vmatprep.subr.mxu0 0.0
    %96 = vmatpush2.msra.mxu0 0.0
    %97 = vmatprep.subr.mxu0 0.0
    %98 = vmatpush2.msra.mxu0 0.0
    %99 = vmatprep.subr.mxu0 0.0
    %100 = vmatpush2.msra.mxu0 0.0
    %101 = vmatprep.subr.mxu0 0.0
    %102 = vmatpush2.msra.mxu0 0.0
    %103 = vmatprep.subr.mxu0 0.0
    %104 = vmatpush2.msra.mxu0 0.0
    %105 = vmatprep.subr.mxu0 0.0
    %106 = vmatpush2.msra.mxu0 0.0
    %107 = vmatprep.subr.mxu0 0.0
    %108 = vmatpush2.msra.mxu0 0.0
    %109 = vmatprep.subr.mxu0 0.0
    %110 = vmatpush2.msra.mxu0 0.0
    %111 = vmatprep.subr.mxu0 0.0
    %112 = vmatpush2.msra.mxu0 0.0
    %113 = vmatprep.subr.mxu0 0.0
    %114 = vmatpush2.msra.mxu0 0.0
    %115 = vmatprep.subr.mxu0 0.0
    %116 = vmatpush2.msra.mxu0 0.0
    %117 = vmatprep.subr.mxu0 0.0
    %118 = vmatpush2.msra.mxu0 0.0
    %119 = vmatprep.subr.mxu0 0.0
    %120 = vmatpush2.msra.mxu0 0.0
    %121 = vmatprep.subr.mxu0 0.0
    %122 = vmatpush2.msra.mxu0 0.0
    %123 = vmatprep.subr.mxu0 0.0
    %124 = vmatpush2.msra.mxu0 0.0
    %125 = vmatprep.subr.mxu0 0.0
    %126 = vmatpush2.msra.mxu0 0.0
    %127 = vmatprep.mubr.f32.mxu0 0.0
    %128 = vmatmul.mubr.f32.gmra.mxu0 %v61
    %v129 = vpop.f32.mrf.mxu0
    %v130 = vadd.f32 %v58, %v129
    %v131 = vpop.f32.mrf.mxu0
    %132 = vdwg.mxu0
    %v133 = vlaneseq
    %v134 = vshrl.u32 %v133, 7
    %v135 = vsub.s32 0, %v134
    %v136 = vrot.slane %v52, %v135
    %vm137 = vcmask 130048
    %v139 = vsel %vm137, 0.0, 0
    %141 = vmatprep.subr.mxu0 0.0
    %142 = vmatpush1.msra.mxu0 0.0
    %143 = vmatprep.subr.mxu0 0.0
    %144 = vmatpush1.msra.mxu0 0.0
    %145 = vmatprep.subr.mxu0 0.0
    %146 = vmatpush1.msra.mxu0 0.0
    %147 = vmatprep.subr.mxu0 0.0
    %148 = vmatpush1.msra.mxu0 0.0
    %149 = vmatprep.subr.mxu0 0.0
    %150 = vmatpush1.msra.mxu0 0.0
    %151 = vmatprep.subr.mxu0 0.0
    %152 = vmatpush1.msra.mxu0 0.0
    %153 = vmatprep.subr.mxu0 0.0
    %154 = vmatpush1.msra.mxu0 0.0
    %155 = vmatprep.subr.mxu0 0.0
    %156 = vmatpush1.msra.mxu0 0.0
    %157 = vmatprep.subr.mxu0 0.0
    %158 = vmatpush1.msra.mxu0 0.0
    %159 = vmatprep.subr.mxu0 0.0
    %160 = vmatpush1.msra.mxu0 0.0
    %161 = vmatprep.subr.mxu0 0.0
    %162 = vmatpush1.msra.mxu0 0.0
    %163 = vmatprep.subr.mxu0 0.0
    %164 = vmatpush1.msra.mxu0 0.0
    %165 = vmatprep.subr.mxu0 0.0
    %166 = vmatpush1.msra.mxu0 0.0
    %167 = vmatprep.subr.mxu0 0.0
    %168 = vmatpush1.msra.mxu0 0.0
    %169 = vmatprep.subr.mxu0 0.0
    %170 = vmatpush1.msra.mxu0 %v40
    %171 = vmatprep.subr.mxu0 0.0
    %172 = vmatpush1.msra.mxu0 %v39
    %173 = vmatprep.subr.mxu0 0.0
    %174 = vmatpush2.msra.mxu0 0.0
    %175 = vmatprep.subr.mxu0 0.0
    %176 = vmatpush2.msra.mxu0 0.0
    %177 = vmatprep.subr.mxu0 0.0
    %178 = vmatpush2.msra.mxu0 0.0
    %179 = vmatprep.subr.mxu0 0.0
    %180 = vmatpush2.msra.mxu0 0.0
    %181 = vmatprep.subr.mxu0 0.0
    %182 = vmatpush2.msra.mxu0 0.0
    %183 = vmatprep.subr.mxu0 0.0
    %184 = vmatpush2.msra.mxu0 0.0
    %185 = vmatprep.subr.mxu0 0.0
    %186 = vmatpush2.msra.mxu0 0.0
    %187 = vmatprep.subr.mxu0 0.0
    %188 = vmatpush2.msra.mxu0 0.0
    %189 = vmatprep.subr.mxu0 0.0
    %190 = vmatpush2.msra.mxu0 0.0
    %191 = vmatprep.subr.mxu0 0.0
    %192 = vmatpush2.msra.mxu0 0.0
    %193 = vmatprep.subr.mxu0 0.0
    %194 = vmatpush2.msra.mxu0 0.0
    %195 = vmatprep.subr.mxu0 0.0
    %196 = vmatpush2.msra.mxu0 0.0
    %197 = vmatprep.subr.mxu0 0.0
    %198 = vmatpush2.msra.mxu0 0.0
    %199 = vmatprep.subr.mxu0 0.0
    %200 = vmatpush2.msra.mxu0 0.0
    %201 = vmatprep.subr.mxu0 0.0
    %202 = vmatpush2.msra.mxu0 0.0
    %203 = vmatprep.subr.mxu0 0.0
    %204 = vmatpush2.msra.mxu0 0.0
    %205 = vmatprep.mubr.f32.mxu0 0.0
    %206 = vmatmul.mubr.f32.gmra.mxu0 %v139
    %v207 = vpop.f32.mrf.mxu0
    %v208 = vadd.f32 0.0, %v207
    %v209 = vpop.f32.mrf.mxu0
    %210 = vdwg.mxu0
    %v211 = vadd.f32 %v130, %v208
    %v212 = vxor.u32 %v211, 2147483648
    %v213 = vmul.f32 %v212, 1.442695
    %v214 = vpow.pop %v213
    %v215 = vadd.f32 %v214, 1.0
    %v216 = vrcp.pop %v215
    %v217 = vmul.f32 1.0, %v216
    %v218 = vtanh.pop %v211
    %v219 = vmul.f32 %v217, 0.0
    %221 = vrot.lane.b32.xlu0 %v218, 80
    %v222 = vpop.permute.xlu0 %221
    %v224 = vmul.f32 %v217, %v222
    %226 = vrot.lane.b32.xlu0 %v224, 16
    %v227 = vpop.permute.xlu0 %226
    %v229 = vadd.f32 %v219, %v227
    %v230 = vtanh.pop %v229
    %232 = vrot.lane.b32.xlu0 %v230, 16
    %v233 = vpop.permute.xlu0 %232
    %v235 = vmul.f32 %v217, %v233
    %vm236 = vcmask 261120
    %v237 = vsel %vm236, 0.0, 0
    %239 = vmatprep.subr.mxu0 0.0
    %240 = vmatpush1.msra.mxu0 0.0
    %241 = vmatprep.subr.mxu0 0.0
    %242 = vmatpush1.msra.mxu0 0.0
    %243 = vmatprep.subr.mxu0 0.0
    %244 = vmatpush1.msra.mxu0 0.0
    %245 = vmatprep.subr.mxu0 0.0
    %246 = vmatpush1.msra.mxu0 0.0
    %247 = vmatprep.subr.mxu0 0.0
    %248 = vmatpush1.msra.mxu0 0.0
    %249 = vmatprep.subr.mxu0 0.0
    %250 = vmatpush1.msra.mxu0 0.0
    %251 = vmatprep.subr.mxu0 0.0
    %252 = vmatpush1.msra.mxu0 0.0
    %253 = vmatprep.subr.mxu0 0.0
    %254 = vmatpush1.msra.mxu0 0.0
    %255 = vmatprep.subr.mxu0 0.0
    %256 = vmatpush1.msra.mxu0 0.0
    %257 = vmatprep.subr.mxu0 0.0
    %258 = vmatpush1.msra.mxu0 0.0
    %259 = vmatprep.subr.mxu0 0.0
    %260 = vmatpush1.msra.mxu0 0.0
    %261 = vmatprep.subr.mxu0 0.0
    %262 = vmatpush1.msra.mxu0 0.0
    %263 = vmatprep.subr.mxu0 0.0
    %264 = vmatpush1.msra.mxu0 %v46
    %265 = vmatprep.subr.mxu0 0.0
    %266 = vmatpush1.msra.mxu0 %v45
    %267 = vmatprep.subr.mxu0 0.0
    %268 = vmatpush1.msra.mxu0 %v44
    %269 = vmatprep.subr.mxu0 0.0
    %270 = vmatpush1.msra.mxu0 %v43
    %271 = vmatprep.subr.mxu0 0.0
    %272 = vmatpush2.msra.mxu0 0.0
    %273 = vmatprep.subr.mxu0 0.0
    %274 = vmatpush2.msra.mxu0 0.0
    %275 = vmatprep.subr.mxu0 0.0
    %276 = vmatpush2.msra.mxu0 0.0
    %277 = vmatprep.subr.mxu0 0.0
    %278 = vmatpush2.msra.mxu0 0.0
    %279 = vmatprep.subr.mxu0 0.0
    %280 = vmatpush2.msra.mxu0 0.0
    %281 = vmatprep.subr.mxu0 0.0
    %282 = vmatpush2.msra.mxu0 0.0
    %283 = vmatprep.subr.mxu0 0.0
    %284 = vmatpush2.msra.mxu0 0.0
    %285 = vmatprep.subr.mxu0 0.0
    %286 = vmatpush2.msra.mxu0 0.0
    %287 = vmatprep.subr.mxu0 0.0
    %288 = vmatpush2.msra.mxu0 0.0
    %289 = vmatprep.subr.mxu0 0.0
    %290 = vmatpush2.msra.mxu0 0.0
    %291 = vmatprep.subr.mxu0 0.0
    %292 = vmatpush2.msra.mxu0 0.0
    %293 = vmatprep.subr.mxu0 0.0
    %294 = vmatpush2.msra.mxu0 0.0
    %295 = vmatprep.subr.mxu0 0.0
    %296 = vmatpush2.msra.mxu0 0.0
    %297 = vmatprep.subr.mxu0 0.0
    %298 = vmatpush2.msra.mxu0 0.0
    %299 = vmatprep.subr.mxu0 0.0
    %300 = vmatpush2.msra.mxu0 0.0
    %301 = vmatprep.subr.mxu0 0.0
    %302 = vmatpush2.msra.mxu0 0.0
    %303 = vmatprep.mubr.f32.mxu0 0.0
    %304 = vmatmul.mubr.f32.gmra.mxu0 %v237
    %v305 = vpop.f32.mrf.mxu0
    %v306 = vadd.f32 0.0, %v305
    %v307 = vpop.f32.mrf.mxu0
    %308 = vdwg.mxu0
    %310 = vrot.lane.b32.xlu0 %v235, 96
    %v311 = vpop.permute.xlu0 %310
    %v312 = vsel %vm137, %v311, 0
    %314 = vmatprep.subr.mxu0 0.0
    %315 = vmatpush1.msra.mxu0 0.0
    %316 = vmatprep.subr.mxu0 0.0
    %317 = vmatpush1.msra.mxu0 0.0
    %318 = vmatprep.subr.mxu0 0.0
    %319 = vmatpush1.msra.mxu0 0.0
    %320 = vmatprep.subr.mxu0 0.0
    %321 = vmatpush1.msra.mxu0 0.0
    %322 = vmatprep.subr.mxu0 0.0
    %323 = vmatpush1.msra.mxu0 0.0
    %324 = vmatprep.subr.mxu0 0.0
    %325 = vmatpush1.msra.mxu0 0.0
    %326 = vmatprep.subr.mxu0 0.0
    %327 = vmatpush1.msra.mxu0 0.0
    %328 = vmatprep.subr.mxu0 0.0
    %329 = vmatpush1.msra.mxu0 0.0
    %330 = vmatprep.subr.mxu0 0.0
    %331 = vmatpush1.msra.mxu0 0.0
    %332 = vmatprep.subr.mxu0 0.0
    %333 = vmatpush1.msra.mxu0 0.0
    %334 = vmatprep.subr.mxu0 0.0
    %335 = vmatpush1.msra.mxu0 0.0
    %336 = vmatprep.subr.mxu0 0.0
    %337 = vmatpush1.msra.mxu0 0.0
    %338 = vmatprep.subr.mxu0 0.0
    %339 = vmatpush1.msra.mxu0 0.0
    %340 = vmatprep.subr.mxu0 0.0
    %341 = vmatpush1.msra.mxu0 0.0
    %342 = vmatprep.subr.mxu0 0.0
    %343 = vmatpush1.msra.mxu0 %v42
    %344 = vmatprep.subr.mxu0 0.0
    %345 = vmatpush1.msra.mxu0 %v41
    %346 = vmatprep.subr.mxu0 0.0
    %347 = vmatpush2.msra.mxu0 0.0
    %348 = vmatprep.subr.mxu0 0.0
    %349 = vmatpush2.msra.mxu0 0.0
    %350 = vmatprep.subr.mxu0 0.0
    %351 = vmatpush2.msra.mxu0 0.0
    %352 = vmatprep.subr.mxu0 0.0
    %353 = vmatpush2.msra.mxu0 0.0
    %354 = vmatprep.subr.mxu0 0.0
    %355 = vmatpush2.msra.mxu0 0.0
    %356 = vmatprep.subr.mxu0 0.0
    %357 = vmatpush2.msra.mxu0 0.0
    %358 = vmatprep.subr.mxu0 0.0
    %359 = vmatpush2.msra.mxu0 0.0
    %360 = vmatprep.subr.mxu0 0.0
    %361 = vmatpush2.msra.mxu0 0.0
    %362 = vmatprep.subr.mxu0 0.0
    %363 = vmatpush2.msra.mxu0 0.0
    %364 = vmatprep.subr.mxu0 0.0
    %365 = vmatpush2.msra.mxu0 0.0
    %366 = vmatprep.subr.mxu0 0.0
    %367 = vmatpush2.msra.mxu0 0.0
    %368 = vmatprep.subr.mxu0 0.0
    %369 = vmatpush2.msra.mxu0 0.0
    %370 = vmatprep.subr.mxu0 0.0
    %371 = vmatpush2.msra.mxu0 0.0
    %372 = vmatprep.subr.mxu0 0.0
    %373 = vmatpush2.msra.mxu0 0.0
    %374 = vmatprep.subr.mxu0 0.0
    %375 = vmatpush2.msra.mxu0 0.0
    %376 = vmatprep.subr.mxu0 0.0
    %377 = vmatpush2.msra.mxu0 0.0
    %378 = vmatprep.mubr.f32.mxu0 0.0
    %379 = vmatmul.mubr.f32.gmra.mxu0 %v312
    %v380 = vpop.f32.mrf.mxu0
    %v381 = vadd.f32 %v306, %v380
    %v382 = vpop.f32.mrf.mxu0
    %383 = vdwg.mxu0
    %v384 = vadd.f32 %v381, %v136
    %v385 = vxor.u32 %v384, 2147483648
    %v386 = vmul.f32 %v385, 1.442695
    %v387 = vpow.pop %v386
    %v388 = vadd.f32 %v387, 1.0
    %v389 = vrcp.pop %v388
    %v390 = vmul.f32 1.0, %v389
    %v391 = vtanh.pop %v384
    %v392 = vmul.f32 %v390, 0.0
    %394 = vrot.lane.b32.xlu0 %v391, 32
    %v395 = vpop.permute.xlu0 %394
    %v397 = vmul.f32 %v390, %v395
    %399 = vrot.lane.b32.xlu0 %v397, 32
    %v400 = vpop.permute.xlu0 %399
    %v402 = vadd.f32 %v392, %v400
    %v403 = vtanh.pop %v402
    %405 = vrot.lane.b32.xlu0 %v403, 32
    %v406 = vpop.permute.xlu0 %405
    %v408 = vmul.f32 %v390, %v406
    %409 = vmatprep.subr.mxu0 0.0
    %410 = vmatpush1.msra.mxu0 0.0
    %411 = vmatprep.subr.mxu0 0.0
    %412 = vmatpush1.msra.mxu0 0.0
    %413 = vmatprep.subr.mxu0 0.0
    %414 = vmatpush1.msra.mxu0 0.0
    %415 = vmatprep.subr.mxu0 0.0
    %416 = vmatpush1.msra.mxu0 0.0
    %417 = vmatprep.subr.mxu0 0.0
    %418 = vmatpush1.msra.mxu0 0.0
    %419 = vmatprep.subr.mxu0 0.0
    %420 = vmatpush1.msra.mxu0 0.0
    %421 = vmatprep.subr.mxu0 0.0
    %422 = vmatpush1.msra.mxu0 0.0
    %423 = vmatprep.subr.mxu0 0.0
    %424 = vmatpush1.msra.mxu0 0.0
    %425 = vmatprep.subr.mxu0 0.0
    %426 = vmatpush1.msra.mxu0 0.0
    %427 = vmatprep.subr.mxu0 0.0
    %428 = vmatpush1.msra.mxu0 0.0
    %429 = vmatprep.subr.mxu0 0.0
    %430 = vmatpush1.msra.mxu0 0.0
    %431 = vmatprep.subr.mxu0 0.0
    %432 = vmatpush1.msra.mxu0 0.0
    %433 = vmatprep.subr.mxu0 0.0
    %434 = vmatpush1.msra.mxu0 0.0
    %435 = vmatprep.subr.mxu0 0.0
    %436 = vmatpush1.msra.mxu0 0.0
    %437 = vmatprep.subr.mxu0 0.0
    %438 = vmatpush1.msra.mxu0 %v40
    %439 = vmatprep.subr.mxu0 0.0
    %440 = vmatpush1.msra.mxu0 %v39
    %441 = vmatprep.subr.mxu0 0.0
    %442 = vmatpush2.msra.mxu0 0.0
    %443 = vmatprep.subr.mxu0 0.0
    %444 = vmatpush2.msra.mxu0 0.0
    %445 = vmatprep.subr.mxu0 0.0
    %446 = vmatpush2.msra.mxu0 0.0
    %447 = vmatprep.subr.mxu0 0.0
    %448 = vmatpush2.msra.mxu0 0.0
    %449 = vmatprep.subr.mxu0 0.0
    %450 = vmatpush2.msra.mxu0 0.0
    %451 = vmatprep.subr.mxu0 0.0
    %452 = vmatpush2.msra.mxu0 0.0
    %453 = vmatprep.subr.mxu0 0.0
    %454 = vmatpush2.msra.mxu0 0.0
    %455 = vmatprep.subr.mxu0 0.0
    %456 = vmatpush2.msra.mxu0 0.0
    %457 = vmatprep.subr.mxu0 0.0
    %458 = vmatpush2.msra.mxu0 0.0
    %459 = vmatprep.subr.mxu0 0.0
    %460 = vmatpush2.msra.mxu0 0.0
    %461 = vmatprep.subr.mxu0 0.0
    %462 = vmatpush2.msra.mxu0 0.0
    %463 = vmatprep.subr.mxu0 0.0
    %464 = vmatpush2.msra.mxu0 0.0
    %465 = vmatprep.subr.mxu0 0.0
    %466 = vmatpush2.msra.mxu0 0.0
    %467 = vmatprep.subr.mxu0 0.0
    %468 = vmatpush2.msra.mxu0 0.0
    %469 = vmatprep.subr.mxu0 0.0
    %470 = vmatpush2.msra.mxu0 0.0
    %471 = vmatprep.subr.mxu0 0.0
    %472 = vmatpush2.msra.mxu0 0.0
    %473 = vmatprep.mubr.f32.mxu0 0.0
    %474 = vmatmul.mubr.f32.gmra.mxu0 %v312
    %v475 = vpop.f32.mrf.mxu0
    %v476 = vadd.f32 0.0, %v475
    %v477 = vpop.f32.mrf.mxu0
    %478 = vdwg.mxu0
    %v479 = vadd.f32 %v130, %v476
    %v480 = vxor.u32 %v479, 2147483648
    %v481 = vmul.f32 %v480, 1.442695
    %v482 = vpow.pop %v481
    %v483 = vadd.f32 %v482, 1.0
    %v484 = vrcp.pop %v483
    %v485 = vmul.f32 1.0, %v484
    %v486 = vtanh.pop %v479
    %v487 = vmul.f32 %v485, %v229
    %489 = vrot.lane.b32.xlu0 %v486, 80
    %v490 = vpop.permute.xlu0 %489
    %v492 = vmul.f32 %v485, %v490
    %494 = vrot.lane.b32.xlu0 %v492, 16
    %v495 = vpop.permute.xlu0 %494
    %v497 = vadd.f32 %v487, %v495
    %v498 = vtanh.pop %v497
    %500 = vrot.lane.b32.xlu0 %v498, 16
    %v501 = vpop.permute.xlu0 %500
    %v503 = vmul.f32 %v485, %v501
    %505 = vrot.lane.b32.xlu0 %v408, 64
    %v506 = vpop.permute.xlu0 %505
    %v507 = vsel %vm236, %v506, 0
    %509 = vmatprep.subr.mxu0 0.0
    %510 = vmatpush1.msra.mxu0 0.0
    %511 = vmatprep.subr.mxu0 0.0
    %512 = vmatpush1.msra.mxu0 0.0
    %513 = vmatprep.subr.mxu0 0.0
    %514 = vmatpush1.msra.mxu0 0.0
    %515 = vmatprep.subr.mxu0 0.0
    %516 = vmatpush1.msra.mxu0 0.0
    %517 = vmatprep.subr.mxu0 0.0
    %518 = vmatpush1.msra.mxu0 0.0
    %519 = vmatprep.subr.mxu0 0.0
    %520 = vmatpush1.msra.mxu0 0.0
    %521 = vmatprep.subr.mxu0 0.0
    %522 = vmatpush1.msra.mxu0 0.0
    %523 = vmatprep.subr.mxu0 0.0
    %524 = vmatpush1.msra.mxu0 0.0
    %525 = vmatprep.subr.mxu0 0.0
    %526 = vmatpush1.msra.mxu0 0.0
    %527 = vmatprep.subr.mxu0 0.0
    %528 = vmatpush1.msra.mxu0 0.0
    %529 = vmatprep.subr.mxu0 0.0
    %530 = vmatpush1.msra.mxu0 0.0
    %531 = vmatprep.subr.mxu0 0.0
    %532 = vmatpush1.msra.mxu0 0.0
    %533 = vmatprep.subr.mxu0 0.0
    %534 = vmatpush1.msra.mxu0 %v46
    %535 = vmatprep.subr.mxu0 0.0
    %536 = vmatpush1.msra.mxu0 %v45
    %537 = vmatprep.subr.mxu0 0.0
    %538 = vmatpush1.msra.mxu0 %v44
    %539 = vmatprep.subr.mxu0 0.0
    %540 = vmatpush1.msra.mxu0 %v43
    %541 = vmatprep.subr.mxu0 0.0
    %542 = vmatpush2.msra.mxu0 0.0
    %543 = vmatprep.subr.mxu0 0.0
    %544 = vmatpush2.msra.mxu0 0.0
    %545 = vmatprep.subr.mxu0 0.0
    %546 = vmatpush2.msra.mxu0 0.0
    %547 = vmatprep.subr.mxu0 0.0
    %548 = vmatpush2.msra.mxu0 0.0
    %549 = vmatprep.subr.mxu0 0.0
    %550 = vmatpush2.msra.mxu0 0.0
    %551 = vmatprep.subr.mxu0 0.0
    %552 = vmatpush2.msra.mxu0 0.0
    %553 = vmatprep.subr.mxu0 0.0
    %554 = vmatpush2.msra.mxu0 0.0
    %555 = vmatprep.subr.mxu0 0.0
    %556 = vmatpush2.msra.mxu0 0.0
    %557 = vmatprep.subr.mxu0 0.0
    %558 = vmatpush2.msra.mxu0 0.0
    %559 = vmatprep.subr.mxu0 0.0
    %560 = vmatpush2.msra.mxu0 0.0
    %561 = vmatprep.subr.mxu0 0.0
    %562 = vmatpush2.msra.mxu0 0.0
    %563 = vmatprep.subr.mxu0 0.0
    %564 = vmatpush2.msra.mxu0 0.0
    %565 = vmatprep.subr.mxu0 0.0
    %566 = vmatpush2.msra.mxu0 0.0
    %567 = vmatprep.subr.mxu0 0.0
    %568 = vmatpush2.msra.mxu0 0.0
    %569 = vmatprep.subr.mxu0 0.0
    %570 = vmatpush2.msra.mxu0 0.0
    %571 = vmatprep.subr.mxu0 0.0
    %572 = vmatpush2.msra.mxu0 0.0
    %573 = vmatprep.mubr.f32.mxu0 0.0
    %574 = vmatmul.mubr.f32.gmra.mxu0 %v507
    %v575 = vpop.f32.mrf.mxu0
    %v576 = vadd.f32 0.0, %v575
    %v577 = vpop.f32.mrf.mxu0
    %578 = vdwg.mxu0
    %580 = vrot.lane.b32.xlu0 %v503, 96
    %v581 = vpop.permute.xlu0 %580
    %v582 = vsel %vm137, %v581, 0
    %584 = vmatprep.subr.mxu0 0.0
    %585 = vmatpush1.msra.mxu0 0.0
    %586 = vmatprep.subr.mxu0 0.0
    %587 = vmatpush1.msra.mxu0 0.0
    %588 = vmatprep.subr.mxu0 0.0
    %589 = vmatpush1.msra.mxu0 0.0
    %590 = vmatprep.subr.mxu0 0.0
    %591 = vmatpush1.msra.mxu0 0.0
    %592 = vmatprep.subr.mxu0 0.0
    %593 = vmatpush1.msra.mxu0 0.0
    %594 = vmatprep.subr.mxu0 0.0
    %595 = vmatpush1.msra.mxu0 0.0
    %596 = vmatprep.subr.mxu0 0.0
    %597 = vmatpush1.msra.mxu0 0.0
    %598 = vmatprep.subr.mxu0 0.0
    %599 = vmatpush1.msra.mxu0 0.0
    %600 = vmatprep.subr.mxu0 0.0
    %601 = vmatpush1.msra.mxu0 0.0
    %602 = vmatprep.subr.mxu0 0.0
    %603 = vmatpush1.msra.mxu0 0.0
    %604 = vmatprep.subr.mxu0 0.0
    %605 = vmatpush1.msra.mxu0 0.0
    %606 = vmatprep.subr.mxu0 0.0
    %607 = vmatpush1.msra.mxu0 0.0
    %608 = vmatprep.subr.mxu0 0.0
    %609 = vmatpush1.msra.mxu0 0.0
    %610 = vmatprep.subr.mxu0 0.0
    %611 = vmatpush1.msra.mxu0 0.0
    %612 = vmatprep.subr.mxu0 0.0
    %613 = vmatpush1.msra.mxu0 %v42
    %614 = vmatprep.subr.mxu0 0.0
    %615 = vmatpush1.msra.mxu0 %v41
    %616 = vmatprep.subr.mxu0 0.0
    %617 = vmatpush2.msra.mxu0 0.0
    %618 = vmatprep.subr.mxu0 0.0
    %619 = vmatpush2.msra.mxu0 0.0
    %620 = vmatprep.subr.mxu0 0.0
    %621 = vmatpush2.msra.mxu0 0.0
    %622 = vmatprep.subr.mxu0 0.0
    %623 = vmatpush2.msra.mxu0 0.0
    %624 = vmatprep.subr.mxu0 0.0
    %625 = vmatpush2.msra.mxu0 0.0
    %626 = vmatprep.subr.mxu0 0.0
    %627 = vmatpush2.msra.mxu0 0.0
    %628 = vmatprep.subr.mxu0 0.0
    %629 = vmatpush2.msra.mxu0 0.0
    %630 = vmatprep.subr.mxu0 0.0
    %631 = vmatpush2.msra.mxu0 0.0
    %632 = vmatprep.subr.mxu0 0.0
    %633 = vmatpush2.msra.mxu0 0.0
    %634 = vmatprep.subr.mxu0 0.0
    %635 = vmatpush2.msra.mxu0 0.0
    %636 = vmatprep.subr.mxu0 0.0
    %637 = vmatpush2.msra.mxu0 0.0
    %638 = vmatprep.subr.mxu0 0.0
    %639 = vmatpush2.msra.mxu0 0.0
    %640 = vmatprep.subr.mxu0 0.0
    %641 = vmatpush2.msra.mxu0 0.0
    %642 = vmatprep.subr.mxu0 0.0
    %643 = vmatpush2.msra.mxu0 0.0
    %644 = vmatprep.subr.mxu0 0.0
    %645 = vmatpush2.msra.mxu0 0.0
    %646 = vmatprep.subr.mxu0 0.0
    %647 = vmatpush2.msra.mxu0 0.0
    %648 = vmatprep.mubr.f32.mxu0 0.0
    %649 = vmatmul.mubr.f32.gmra.mxu0 %v582
    %v650 = vpop.f32.mrf.mxu0
    %v651 = vadd.f32 %v576, %v650
    %v652 = vpop.f32.mrf.mxu0
    %653 = vdwg.mxu0
    %v654 = vadd.f32 %v651, %v136
    %v655 = vxor.u32 %v654, 2147483648
    %v656 = vmul.f32 %v655, 1.442695
    %v657 = vpow.pop %v656
    %v658 = vadd.f32 %v657, 1.0
    %v659 = vrcp.pop %v658
    %v660 = vmul.f32 1.0, %v659
    %v661 = vtanh.pop %v654
    %v662 = vmul.f32 %v660, %v402
    %664 = vrot.lane.b32.xlu0 %v661, 32
    %v665 = vpop.permute.xlu0 %664
    %v667 = vmul.f32 %v660, %v665
    %669 = vrot.lane.b32.xlu0 %v667, 32
    %v670 = vpop.permute.xlu0 %669
    %v672 = vadd.f32 %v662, %v670
    %v673 = vtanh.pop %v672
    %675 = vrot.lane.b32.xlu0 %v673, 32
    %v676 = vpop.permute.xlu0 %675
    %v678 = vmul.f32 %v660, %v676
    %679 = vmatprep.subr.mxu0 0.0
    %680 = vmatpush1.msra.mxu0 0.0
    %681 = vmatprep.subr.mxu0 0.0
    %682 = vmatpush1.msra.mxu0 0.0
    %683 = vmatprep.subr.mxu0 0.0
    %684 = vmatpush1.msra.mxu0 0.0
    %685 = vmatprep.subr.mxu0 0.0
    %686 = vmatpush1.msra.mxu0 0.0
    %687 = vmatprep.subr.mxu0 0.0
    %688 = vmatpush1.msra.mxu0 0.0
    %689 = vmatprep.subr.mxu0 0.0
    %690 = vmatpush1.msra.mxu0 0.0
    %691 = vmatprep.subr.mxu0 0.0
    %692 = vmatpush1.msra.mxu0 0.0
    %693 = vmatprep.subr.mxu0 0.0
    %694 = vmatpush1.msra.mxu0 0.0
    %695 = vmatprep.subr.mxu0 0.0
    %696 = vmatpush1.msra.mxu0 0.0
    %697 = vmatprep.subr.mxu0 0.0
    %698 = vmatpush1.msra.mxu0 0.0
    %699 = vmatprep.subr.mxu0 0.0
    %700 = vmatpush1.msra.mxu0 0.0
    %701 = vmatprep.subr.mxu0 0.0
    %702 = vmatpush1.msra.mxu0 0.0
    %703 = vmatprep.subr.mxu0 0.0
    %704 = vmatpush1.msra.mxu0 0.0
    %705 = vmatprep.subr.mxu0 0.0
    %706 = vmatpush1.msra.mxu0 0.0
    %707 = vmatprep.subr.mxu0 0.0
    %708 = vmatpush1.msra.mxu0 %v40
    %709 = vmatprep.subr.mxu0 0.0
    %710 = vmatpush1.msra.mxu0 %v39
    %711 = vmatprep.subr.mxu0 0.0
    %712 = vmatpush2.msra.mxu0 0.0
    %713 = vmatprep.subr.mxu0 0.0
    %714 = vmatpush2.msra.mxu0 0.0
    %715 = vmatprep.subr.mxu0 0.0
    %716 = vmatpush2.msra.mxu0 0.0
    %717 = vmatprep.subr.mxu0 0.0
    %718 = vmatpush2.msra.mxu0 0.0
    %719 = vmatprep.subr.mxu0 0.0
    %720 = vmatpush2.msra.mxu0 0.0
    %721 = vmatprep.subr.mxu0 0.0
    %722 = vmatpush2.msra.mxu0 0.0
    %723 = vmatprep.subr.mxu0 0.0
    %724 = vmatpush2.msra.mxu0 0.0
    %725 = vmatprep.subr.mxu0 0.0
    %726 = vmatpush2.msra.mxu0 0.0
    %727 = vmatprep.subr.mxu0 0.0
    %728 = vmatpush2.msra.mxu0 0.0
    %729 = vmatprep.subr.mxu0 0.0
    %730 = vmatpush2.msra.mxu0 0.0
    %731 = vmatprep.subr.mxu0 0.0
    %732 = vmatpush2.msra.mxu0 0.0
    %733 = vmatprep.subr.mxu0 0.0
    %734 = vmatpush2.msra.mxu0 0.0
    %735 = vmatprep.subr.mxu0 0.0
    %736 = vmatpush2.msra.mxu0 0.0
    %737 = vmatprep.subr.mxu0 0.0
    %738 = vmatpush2.msra.mxu0 0.0
    %739 = vmatprep.subr.mxu0 0.0
    %740 = vmatpush2.msra.mxu0 0.0
    %741 = vmatprep.subr.mxu0 0.0
    %742 = vmatpush2.msra.mxu0 0.0
    %743 = vmatprep.mubr.f32.mxu0 0.0
    %744 = vmatmul.mubr.f32.gmra.mxu0 %v582
    %v745 = vpop.f32.mrf.mxu0
    %v746 = vadd.f32 0.0, %v745
    %v747 = vpop.f32.mrf.mxu0
    %748 = vdwg.mxu0
    %v749 = vadd.f32 %v130, %v746
    %v750 = vxor.u32 %v749, 2147483648
    %v751 = vmul.f32 %v750, 1.442695
    %v752 = vpow.pop %v751
    %v753 = vadd.f32 %v752, 1.0
    %v754 = vrcp.pop %v753
    %v755 = vmul.f32 1.0, %v754
    %v756 = vtanh.pop %v749
    %v757 = vmul.f32 %v755, %v497
    %759 = vrot.lane.b32.xlu0 %v756, 80
    %v760 = vpop.permute.xlu0 %759
    %v762 = vmul.f32 %v755, %v760
    %764 = vrot.lane.b32.xlu0 %v762, 16
    %v765 = vpop.permute.xlu0 %764
    %v767 = vadd.f32 %v757, %v765
    %v768 = vtanh.pop %v767
    %770 = vrot.lane.b32.xlu0 %v768, 16
    %v771 = vpop.permute.xlu0 %770
    %v773 = vmul.f32 %v755, %v771
    %775 = vrot.lane.b32.xlu0 %v678, 64
    %v776 = vpop.permute.xlu0 %775
    %v777 = vsel %vm236, %v776, 0
    %779 = vmatprep.subr.mxu0 0.0
    %780 = vmatpush1.msra.mxu0 0.0
    %781 = vmatprep.subr.mxu0 0.0
    %782 = vmatpush1.msra.mxu0 0.0
    %783 = vmatprep.subr.mxu0 0.0
    %784 = vmatpush1.msra.mxu0 0.0
    %785 = vmatprep.subr.mxu0 0.0
    %786 = vmatpush1.msra.mxu0 0.0
    %787 = vmatprep.subr.mxu0 0.0
    %788 = vmatpush1.msra.mxu0 0.0
    %789 = vmatprep.subr.mxu0 0.0
    %790 = vmatpush1.msra.mxu0 0.0
    %791 = vmatprep.subr.mxu0 0.0
    %792 = vmatpush1.msra.mxu0 0.0
    %793 = vmatprep.subr.mxu0 0.0
    %794 = vmatpush1.msra.mxu0 0.0
    %795 = vmatprep.subr.mxu0 0.0
    %796 = vmatpush1.msra.mxu0 0.0
    %797 = vmatprep.subr.mxu0 0.0
    %798 = vmatpush1.msra.mxu0 0.0
    %799 = vmatprep.subr.mxu0 0.0
    %800 = vmatpush1.msra.mxu0 0.0
    %801 = vmatprep.subr.mxu0 0.0
    %802 = vmatpush1.msra.mxu0 0.0
    %803 = vmatprep.subr.mxu0 0.0
    %804 = vmatpush1.msra.mxu0 %v46
    %805 = vmatprep.subr.mxu0 0.0
    %806 = vmatpush1.msra.mxu0 %v45
    %807 = vmatprep.subr.mxu0 0.0
    %808 = vmatpush1.msra.mxu0 %v44
    %809 = vmatprep.subr.mxu0 0.0
    %810 = vmatpush1.msra.mxu0 %v43
    %811 = vmatprep.subr.mxu0 0.0
    %812 = vmatpush2.msra.mxu0 0.0
    %813 = vmatprep.subr.mxu0 0.0
    %814 = vmatpush2.msra.mxu0 0.0
    %815 = vmatprep.subr.mxu0 0.0
    %816 = vmatpush2.msra.mxu0 0.0
    %817 = vmatprep.subr.mxu0 0.0
    %818 = vmatpush2.msra.mxu0 0.0
    %819 = vmatprep.subr.mxu0 0.0
    %820 = vmatpush2.msra.mxu0 0.0
    %821 = vmatprep.subr.mxu0 0.0
    %822 = vmatpush2.msra.mxu0 0.0
    %823 = vmatprep.subr.mxu0 0.0
    %824 = vmatpush2.msra.mxu0 0.0
    %825 = vmatprep.subr.mxu0 0.0
    %826 = vmatpush2.msra.mxu0 0.0
    %827 = vmatprep.subr.mxu0 0.0
    %828 = vmatpush2.msra.mxu0 0.0
    %829 = vmatprep.subr.mxu0 0.0
    %830 = vmatpush2.msra.mxu0 0.0
    %831 = vmatprep.subr.mxu0 0.0
    %832 = vmatpush2.msra.mxu0 0.0
    %833 = vmatprep.subr.mxu0 0.0
    %834 = vmatpush2.msra.mxu0 0.0
    %835 = vmatprep.subr.mxu0 0.0
    %836 = vmatpush2.msra.mxu0 0.0
    %837 = vmatprep.subr.mxu0 0.0
    %838 = vmatpush2.msra.mxu0 0.0
    %839 = vmatprep.subr.mxu0 0.0
    %840 = vmatpush2.msra.mxu0 0.0
    %841 = vmatprep.subr.mxu0 0.0
    %842 = vmatpush2.msra.mxu0 0.0
    %843 = vmatprep.mubr.f32.mxu0 0.0
    %844 = vmatmul.mubr.f32.gmra.mxu0 %v777
    %v845 = vpop.f32.mrf.mxu0
    %v846 = vadd.f32 0.0, %v845
    %v847 = vpop.f32.mrf.mxu0
    %848 = vdwg.mxu0
    %850 = vrot.lane.b32.xlu0 %v773, 96
    %v851 = vpop.permute.xlu0 %850
    %v852 = vsel %vm137, %v851, 0
    %854 = vmatprep.subr.mxu0 0.0
    %855 = vmatpush1.msra.mxu0 0.0
    %856 = vmatprep.subr.mxu0 0.0
    %857 = vmatpush1.msra.mxu0 0.0
    %858 = vmatprep.subr.mxu0 0.0
    %859 = vmatpush1.msra.mxu0 0.0
    %860 = vmatprep.subr.mxu0 0.0
    %861 = vmatpush1.msra.mxu0 0.0
    %862 = vmatprep.subr.mxu0 0.0
    %863 = vmatpush1.msra.mxu0 0.0
    %864 = vmatprep.subr.mxu0 0.0
    %865 = vmatpush1.msra.mxu0 0.0
    %866 = vmatprep.subr.mxu0 0.0
    %867 = vmatpush1.msra.mxu0 0.0
    %868 = vmatprep.subr.mxu0 0.0
    %869 = vmatpush1.msra.mxu0 0.0
    %870 = vmatprep.subr.mxu0 0.0
    %871 = vmatpush1.msra.mxu0 0.0
    %872 = vmatprep.subr.mxu0 0.0
    %873 = vmatpush1.msra.mxu0 0.0
    %874 = vmatprep.subr.mxu0 0.0
    %875 = vmatpush1.msra.mxu0 0.0
    %876 = vmatprep.subr.mxu0 0.0
    %877 = vmatpush1.msra.mxu0 0.0
    %878 = vmatprep.subr.mxu0 0.0
    %879 = vmatpush1.msra.mxu0 0.0
    %880 = vmatprep.subr.mxu0 0.0
    %881 = vmatpush1.msra.mxu0 0.0
    %882 = vmatprep.subr.mxu0 0.0
    %883 = vmatpush1.msra.mxu0 %v42
    %884 = vmatprep.subr.mxu0 0.0
    %885 = vmatpush1.msra.mxu0 %v41
    %886 = vmatprep.subr.mxu0 0.0
    %887 = vmatpush2.msra.mxu0 0.0
    %888 = vmatprep.subr.mxu0 0.0
    %889 = vmatpush2.msra.mxu0 0.0
    %890 = vmatprep.subr.mxu0 0.0
    %891 = vmatpush2.msra.mxu0 0.0
    %892 = vmatprep.subr.mxu0 0.0
    %893 = vmatpush2.msra.mxu0 0.0
    %894 = vmatprep.subr.mxu0 0.0
    %895 = vmatpush2.msra.mxu0 0.0
    %896 = vmatprep.subr.mxu0 0.0
    %897 = vmatpush2.msra.mxu0 0.0
    %898 = vmatprep.subr.mxu0 0.0
    %899 = vmatpush2.msra.mxu0 0.0
    %900 = vmatprep.subr.mxu0 0.0
    %901 = vmatpush2.msra.mxu0 0.0
    %902 = vmatprep.subr.mxu0 0.0
    %903 = vmatpush2.msra.mxu0 0.0
    %904 = vmatprep.subr.mxu0 0.0
    %905 = vmatpush2.msra.mxu0 0.0
    %906 = vmatprep.subr.mxu0 0.0
    %907 = vmatpush2.msra.mxu0 0.0
    %908 = vmatprep.subr.mxu0 0.0
    %909 = vmatpush2.msra.mxu0 0.0
    %910 = vmatprep.subr.mxu0 0.0
    %911 = vmatpush2.msra.mxu0 0.0
    %912 = vmatprep.subr.mxu0 0.0
    %913 = vmatpush2.msra.mxu0 0.0
    %914 = vmatprep.subr.mxu0 0.0
    %915 = vmatpush2.msra.mxu0 0.0
    %916 = vmatprep.subr.mxu0 0.0
    %917 = vmatpush2.msra.mxu0 0.0
    %918 = vmatprep.mubr.f32.mxu0 0.0
    %919 = vmatmul.mubr.f32.gmra.mxu0 %v852
    %v920 = vpop.f32.mrf.mxu0
    %v921 = vadd.f32 %v846, %v920
    %v922 = vpop.f32.mrf.mxu0
    %923 = vdwg.mxu0
    %v924 = vadd.f32 %v921, %v136
    %v925 = vxor.u32 %v924, 2147483648
    %v926 = vmul.f32 %v925, 1.442695
    %v927 = vpow.pop %v926
    %v928 = vadd.f32 %v927, 1.0
    %v929 = vrcp.pop %v928
    %v930 = vmul.f32 1.0, %v929
    %v931 = vtanh.pop %v924
    %v932 = vmul.f32 %v930, %v672
    %934 = vrot.lane.b32.xlu0 %v931, 32
    %v935 = vpop.permute.xlu0 %934
    %v937 = vmul.f32 %v930, %v935
    %939 = vrot.lane.b32.xlu0 %v937, 32
    %v940 = vpop.permute.xlu0 %939
    %v942 = vadd.f32 %v932, %v940
    %v943 = vtanh.pop %v942
    %945 = vrot.lane.b32.xlu0 %v943, 32
    %v946 = vpop.permute.xlu0 %945
    %v948 = vmul.f32 %v930, %v946
    %949 = vmatprep.subr.mxu0 0.0
    %950 = vmatpush1.msra.mxu0 0.0
    %951 = vmatprep.subr.mxu0 0.0
    %952 = vmatpush1.msra.mxu0 0.0
    %953 = vmatprep.subr.mxu0 0.0
    %954 = vmatpush1.msra.mxu0 0.0
    %955 = vmatprep.subr.mxu0 0.0
    %956 = vmatpush1.msra.mxu0 0.0
    %957 = vmatprep.subr.mxu0 0.0
    %958 = vmatpush1.msra.mxu0 0.0
    %959 = vmatprep.subr.mxu0 0.0
    %960 = vmatpush1.msra.mxu0 0.0
    %961 = vmatprep.subr.mxu0 0.0
    %962 = vmatpush1.msra.mxu0 0.0
    %963 = vmatprep.subr.mxu0 0.0
    %964 = vmatpush1.msra.mxu0 0.0
    %965 = vmatprep.subr.mxu0 0.0
    %966 = vmatpush1.msra.mxu0 0.0
    %967 = vmatprep.subr.mxu0 0.0
    %968 = vmatpush1.msra.mxu0 0.0
    %969 = vmatprep.subr.mxu0 0.0
    %970 = vmatpush1.msra.mxu0 0.0
    %971 = vmatprep.subr.mxu0 0.0
    %972 = vmatpush1.msra.mxu0 0.0
    %973 = vmatprep.subr.mxu0 0.0
    %974 = vmatpush1.msra.mxu0 0.0
    %975 = vmatprep.subr.mxu0 0.0
    %976 = vmatpush1.msra.mxu0 0.0
    %977 = vmatprep.subr.mxu0 0.0
    %978 = vmatpush1.msra.mxu0 %v40
    %979 = vmatprep.subr.mxu0 0.0
    %980 = vmatpush1.msra.mxu0 %v39
    %981 = vmatprep.subr.mxu0 0.0
    %982 = vmatpush2.msra.mxu0 0.0
    %983 = vmatprep.subr.mxu0 0.0
    %984 = vmatpush2.msra.mxu0 0.0
    %985 = vmatprep.subr.mxu0 0.0
    %986 = vmatpush2.msra.mxu0 0.0
    %987 = vmatprep.subr.mxu0 0.0
    %988 = vmatpush2.msra.mxu0 0.0
    %989 = vmatprep.subr.mxu0 0.0
    %990 = vmatpush2.msra.mxu0 0.0
    %991 = vmatprep.subr.mxu0 0.0
    %992 = vmatpush2.msra.mxu0 0.0
    %993 = vmatprep.subr.mxu0 0.0
    %994 = vmatpush2.msra.mxu0 0.0
    %995 = vmatprep.subr.mxu0 0.0
    %996 = vmatpush2.msra.mxu0 0.0
    %997 = vmatprep.subr.mxu0 0.0
    %998 = vmatpush2.msra.mxu0 0.0
    %999 = vmatprep.subr.mxu0 0.0
    %1000 = vmatpush2.msra.mxu0 0.0
    %1001 = vmatprep.subr.mxu0 0.0
    %1002 = vmatpush2.msra.mxu0 0.0
    %1003 = vmatprep.subr.mxu0 0.0
    %1004 = vmatpush2.msra.mxu0 0.0
    %1005 = vmatprep.subr.mxu0 0.0
    %1006 = vmatpush2.msra.mxu0 0.0
    %1007 = vmatprep.subr.mxu0 0.0
    %1008 = vmatpush2.msra.mxu0 0.0
    %1009 = vmatprep.subr.mxu0 0.0
    %1010 = vmatpush2.msra.mxu0 0.0
    %1011 = vmatprep.subr.mxu0 0.0
    %1012 = vmatpush2.msra.mxu0 0.0
    %1013 = vmatprep.mubr.f32.mxu0 0.0
    %1014 = vmatmul.mubr.f32.gmra.mxu0 %v852
    %v1015 = vpop.f32.mrf.mxu0
    %v1016 = vadd.f32 0.0, %v1015
    %v1017 = vpop.f32.mrf.mxu0
    %1018 = vdwg.mxu0
    %v1019 = vadd.f32 %v130, %v1016
    %v1020 = vxor.u32 %v1019, 2147483648
    %v1021 = vmul.f32 %v1020, 1.442695
    %v1022 = vpow.pop %v1021
    %v1023 = vadd.f32 %v1022, 1.0
    %v1024 = vrcp.pop %v1023
    %v1025 = vmul.f32 1.0, %v1024
    %v1026 = vtanh.pop %v1019
    %v1027 = vmul.f32 %v1025, %v767
    %1029 = vrot.lane.b32.xlu0 %v1026, 80
    %v1030 = vpop.permute.xlu0 %1029
    %v1032 = vmul.f32 %v1025, %v1030
    %1034 = vrot.lane.b32.xlu0 %v1032, 16
    %v1035 = vpop.permute.xlu0 %1034
    %v1037 = vadd.f32 %v1027, %v1035
    %v1038 = vtanh.pop %v1037
    %1040 = vrot.lane.b32.xlu0 %v1038, 16
    %v1041 = vpop.permute.xlu0 %1040
    %v1043 = vmul.f32 %v1025, %v1041
    %1045 = vrot.lane.b32.xlu0 %v948, 64
    %v1046 = vpop.permute.xlu0 %1045
    %v1047 = vsel %vm236, %v1046, 0
    %1049 = vmatprep.subr.mxu0 0.0
    %1050 = vmatpush1.msra.mxu0 0.0
    %1051 = vmatprep.subr.mxu0 0.0
    %1052 = vmatpush1.msra.mxu0 0.0
    %1053 = vmatprep.subr.mxu0 0.0
    %1054 = vmatpush1.msra.mxu0 0.0
    %1055 = vmatprep.subr.mxu0 0.0
    %1056 = vmatpush1.msra.mxu0 0.0
    %1057 = vmatprep.subr.mxu0 0.0
    %1058 = vmatpush1.msra.mxu0 0.0
    %1059 = vmatprep.subr.mxu0 0.0
    %1060 = vmatpush1.msra.mxu0 0.0
    %1061 = vmatprep.subr.mxu0 0.0
    %1062 = vmatpush1.msra.mxu0 0.0
    %1063 = vmatprep.subr.mxu0 0.0
    %1064 = vmatpush1.msra.mxu0 0.0
    %1065 = vmatprep.subr.mxu0 0.0
    %1066 = vmatpush1.msra.mxu0 0.0
    %1067 = vmatprep.subr.mxu0 0.0
    %1068 = vmatpush1.msra.mxu0 0.0
    %1069 = vmatprep.subr.mxu0 0.0
    %1070 = vmatpush1.msra.mxu0 0.0
    %1071 = vmatprep.subr.mxu0 0.0
    %1072 = vmatpush1.msra.mxu0 0.0
    %1073 = vmatprep.subr.mxu0 0.0
    %1074 = vmatpush1.msra.mxu0 %v46
    %1075 = vmatprep.subr.mxu0 0.0
    %1076 = vmatpush1.msra.mxu0 %v45
    %1077 = vmatprep.subr.mxu0 0.0
    %1078 = vmatpush1.msra.mxu0 %v44
    %1079 = vmatprep.subr.mxu0 0.0
    %1080 = vmatpush1.msra.mxu0 %v43
    %1081 = vmatprep.subr.mxu0 0.0
    %1082 = vmatpush2.msra.mxu0 0.0
    %1083 = vmatprep.subr.mxu0 0.0
    %1084 = vmatpush2.msra.mxu0 0.0
    %1085 = vmatprep.subr.mxu0 0.0
    %1086 = vmatpush2.msra.mxu0 0.0
    %1087 = vmatprep.subr.mxu0 0.0
    %1088 = vmatpush2.msra.mxu0 0.0
    %1089 = vmatprep.subr.mxu0 0.0
    %1090 = vmatpush2.msra.mxu0 0.0
    %1091 = vmatprep.subr.mxu0 0.0
    %1092 = vmatpush2.msra.mxu0 0.0
    %1093 = vmatprep.subr.mxu0 0.0
    %1094 = vmatpush2.msra.mxu0 0.0
    %1095 = vmatprep.subr.mxu0 0.0
    %1096 = vmatpush2.msra.mxu0 0.0
    %1097 = vmatprep.subr.mxu0 0.0
    %1098 = vmatpush2.msra.mxu0 0.0
    %1099 = vmatprep.subr.mxu0 0.0
    %1100 = vmatpush2.msra.mxu0 0.0
    %1101 = vmatprep.subr.mxu0 0.0
    %1102 = vmatpush2.msra.mxu0 0.0
    %1103 = vmatprep.subr.mxu0 0.0
    %1104 = vmatpush2.msra.mxu0 0.0
    %1105 = vmatprep.subr.mxu0 0.0
    %1106 = vmatpush2.msra.mxu0 0.0
    %1107 = vmatprep.subr.mxu0 0.0
    %1108 = vmatpush2.msra.mxu0 0.0
    %1109 = vmatprep.subr.mxu0 0.0
    %1110 = vmatpush2.msra.mxu0 0.0
    %1111 = vmatprep.subr.mxu0 0.0
    %1112 = vmatpush2.msra.mxu0 0.0
    %1113 = vmatprep.mubr.f32.mxu0 0.0
    %1114 = vmatmul.mubr.f32.gmra.mxu0 %v1047
    %v1115 = vpop.f32.mrf.mxu0
    %v1116 = vadd.f32 0.0, %v1115
    %v1117 = vpop.f32.mrf.mxu0
    %1118 = vdwg.mxu0
    %1120 = vrot.lane.b32.xlu0 %v1043, 96
    %v1121 = vpop.permute.xlu0 %1120
    %v1122 = vsel %vm137, %v1121, 0
    %1124 = vmatprep.subr.mxu0 0.0
    %1125 = vmatpush1.msra.mxu0 0.0
    %1126 = vmatprep.subr.mxu0 0.0
    %1127 = vmatpush1.msra.mxu0 0.0
    %1128 = vmatprep.subr.mxu0 0.0
    %1129 = vmatpush1.msra.mxu0 0.0
    %1130 = vmatprep.subr.mxu0 0.0
    %1131 = vmatpush1.msra.mxu0 0.0
    %1132 = vmatprep.subr.mxu0 0.0
    %1133 = vmatpush1.msra.mxu0 0.0
    %1134 = vmatprep.subr.mxu0 0.0
    %1135 = vmatpush1.msra.mxu0 0.0
    %1136 = vmatprep.subr.mxu0 0.0
    %1137 = vmatpush1.msra.mxu0 0.0
    %1138 = vmatprep.subr.mxu0 0.0
    %1139 = vmatpush1.msra.mxu0 0.0
    %1140 = vmatprep.subr.mxu0 0.0
    %1141 = vmatpush1.msra.mxu0 0.0
    %1142 = vmatprep.subr.mxu0 0.0
    %1143 = vmatpush1.msra.mxu0 0.0
    %1144 = vmatprep.subr.mxu0 0.0
    %1145 = vmatpush1.msra.mxu0 0.0
    %1146 = vmatprep.subr.mxu0 0.0
    %1147 = vmatpush1.msra.mxu0 0.0
    %1148 = vmatprep.subr.mxu0 0.0
    %1149 = vmatpush1.msra.mxu0 0.0
    %1150 = vmatprep.subr.mxu0 0.0
    %1151 = vmatpush1.msra.mxu0 0.0
    %1152 = vmatprep.subr.mxu0 0.0
    %1153 = vmatpush1.msra.mxu0 %v42
    %1154 = vmatprep.subr.mxu0 0.0
    %1155 = vmatpush1.msra.mxu0 %v41
    %1156 = vmatprep.subr.mxu0 0.0
    %1157 = vmatpush2.msra.mxu0 0.0
    %1158 = vmatprep.subr.mxu0 0.0
    %1159 = vmatpush2.msra.mxu0 0.0
    %1160 = vmatprep.subr.mxu0 0.0
    %1161 = vmatpush2.msra.mxu0 0.0
    %1162 = vmatprep.subr.mxu0 0.0
    %1163 = vmatpush2.msra.mxu0 0.0
    %1164 = vmatprep.subr.mxu0 0.0
    %1165 = vmatpush2.msra.mxu0 0.0
    %1166 = vmatprep.subr.mxu0 0.0
    %1167 = vmatpush2.msra.mxu0 0.0
    %1168 = vmatprep.subr.mxu0 0.0
    %1169 = vmatpush2.msra.mxu0 0.0
    %1170 = vmatprep.subr.mxu0 0.0
    %1171 = vmatpush2.msra.mxu0 0.0
    %1172 = vmatprep.subr.mxu0 0.0
    %1173 = vmatpush2.msra.mxu0 0.0
    %1174 = vmatprep.subr.mxu0 0.0
    %1175 = vmatpush2.msra.mxu0 0.0
    %1176 = vmatprep.subr.mxu0 0.0
    %1177 = vmatpush2.msra.mxu0 0.0
    %1178 = vmatprep.subr.mxu0 0.0
    %1179 = vmatpush2.msra.mxu0 0.0
    %1180 = vmatprep.subr.mxu0 0.0
    %1181 = vmatpush2.msra.mxu0 0.0
    %1182 = vmatprep.subr.mxu0 0.0
    %1183 = vmatpush2.msra.mxu0 0.0
    %1184 = vmatprep.subr.mxu0 0.0
    %1185 = vmatpush2.msra.mxu0 0.0
    %1186 = vmatprep.subr.mxu0 0.0
    %1187 = vmatpush2.msra.mxu0 0.0
    %1188 = vmatprep.mubr.f32.mxu0 0.0
    %1189 = vmatmul.mubr.f32.gmra.mxu0 %v1122
    %v1190 = vpop.f32.mrf.mxu0
    %v1191 = vadd.f32 %v1116, %v1190
    %v1192 = vpop.f32.mrf.mxu0
    %1193 = vdwg.mxu0
    %v1194 = vadd.f32 %v1191, %v136
    %v1195 = vxor.u32 %v1194, 2147483648
    %v1196 = vmul.f32 %v1195, 1.442695
    %v1197 = vpow.pop %v1196
    %v1198 = vadd.f32 %v1197, 1.0
    %v1199 = vrcp.pop %v1198
    %v1200 = vmul.f32 1.0, %v1199
    %v1201 = vtanh.pop %v1194
    %v1202 = vmul.f32 %v1200, %v942
    %1204 = vrot.lane.b32.xlu0 %v1201, 32
    %v1205 = vpop.permute.xlu0 %1204
    %v1207 = vmul.f32 %v1200, %v1205
    %1209 = vrot.lane.b32.xlu0 %v1207, 32
    %v1210 = vpop.permute.xlu0 %1209
    %v1212 = vadd.f32 %v1202, %v1210
    %v1213 = vtanh.pop %v1212
    %1215 = vrot.lane.b32.xlu0 %v1213, 32
    %v1216 = vpop.permute.xlu0 %1215
    %v1218 = vmul.f32 %v1200, %v1216
    %1219 = vmatprep.subr.mxu0 0.0
    %1220 = vmatpush1.msra.mxu0 0.0
    %1221 = vmatprep.subr.mxu0 0.0
    %1222 = vmatpush1.msra.mxu0 0.0
    %1223 = vmatprep.subr.mxu0 0.0
    %1224 = vmatpush1.msra.mxu0 0.0
    %1225 = vmatprep.subr.mxu0 0.0
    %1226 = vmatpush1.msra.mxu0 0.0
    %1227 = vmatprep.subr.mxu0 0.0
    %1228 = vmatpush1.msra.mxu0 0.0
    %1229 = vmatprep.subr.mxu0 0.0
    %1230 = vmatpush1.msra.mxu0 0.0
    %1231 = vmatprep.subr.mxu0 0.0
    %1232 = vmatpush1.msra.mxu0 0.0
    %1233 = vmatprep.subr.mxu0 0.0
    %1234 = vmatpush1.msra.mxu0 0.0
    %1235 = vmatprep.subr.mxu0 0.0
    %1236 = vmatpush1.msra.mxu0 0.0
    %1237 = vmatprep.subr.mxu0 0.0
    %1238 = vmatpush1.msra.mxu0 0.0
    %1239 = vmatprep.subr.mxu0 0.0
    %1240 = vmatpush1.msra.mxu0 0.0
    %1241 = vmatprep.subr.mxu0 0.0
    %1242 = vmatpush1.msra.mxu0 0.0
    %1243 = vmatprep.subr.mxu0 0.0
    %1244 = vmatpush1.msra.mxu0 0.0
    %1245 = vmatprep.subr.mxu0 0.0
    %1246 = vmatpush1.msra.mxu0 0.0
    %1247 = vmatprep.subr.mxu0 0.0
    %1248 = vmatpush1.msra.mxu0 %v40
    %1249 = vmatprep.subr.mxu0 0.0
    %1250 = vmatpush1.msra.mxu0 %v39
    %1251 = vmatprep.subr.mxu0 0.0
    %1252 = vmatpush2.msra.mxu0 0.0
    %1253 = vmatprep.subr.mxu0 0.0
    %1254 = vmatpush2.msra.mxu0 0.0
    %1255 = vmatprep.subr.mxu0 0.0
    %1256 = vmatpush2.msra.mxu0 0.0
    %1257 = vmatprep.subr.mxu0 0.0
    %1258 = vmatpush2.msra.mxu0 0.0
    %1259 = vmatprep.subr.mxu0 0.0
    %1260 = vmatpush2.msra.mxu0 0.0
    %1261 = vmatprep.subr.mxu0 0.0
    %1262 = vmatpush2.msra.mxu0 0.0
    %1263 = vmatprep.subr.mxu0 0.0
    %1264 = vmatpush2.msra.mxu0 0.0
    %1265 = vmatprep.subr.mxu0 0.0
    %1266 = vmatpush2.msra.mxu0 0.0
    %1267 = vmatprep.subr.mxu0 0.0
    %1268 = vmatpush2.msra.mxu0 0.0
    %1269 = vmatprep.subr.mxu0 0.0
    %1270 = vmatpush2.msra.mxu0 0.0
    %1271 = vmatprep.subr.mxu0 0.0
    %1272 = vmatpush2.msra.mxu0 0.0
    %1273 = vmatprep.subr.mxu0 0.0
    %1274 = vmatpush2.msra.mxu0 0.0
    %1275 = vmatprep.subr.mxu0 0.0
    %1276 = vmatpush2.msra.mxu0 0.0
    %1277 = vmatprep.subr.mxu0 0.0
    %1278 = vmatpush2.msra.mxu0 0.0
    %1279 = vmatprep.subr.mxu0 0.0
    %1280 = vmatpush2.msra.mxu0 0.0
    %1281 = vmatprep.subr.mxu0 0.0
    %1282 = vmatpush2.msra.mxu0 0.0
    %1283 = vmatprep.mubr.f32.mxu0 0.0
    %1284 = vmatmul.mubr.f32.gmra.mxu0 %v1122
    %v1285 = vpop.f32.mrf.mxu0
    %v1286 = vadd.f32 0.0, %v1285
    %v1287 = vpop.f32.mrf.mxu0
    %1288 = vdwg.mxu0
    %v1289 = vadd.f32 %v130, %v1286
    %v1290 = vxor.u32 %v1289, 2147483648
    %v1291 = vmul.f32 %v1290, 1.442695
    %v1292 = vpow.pop %v1291
    %v1293 = vadd.f32 %v1292, 1.0
    %v1294 = vrcp.pop %v1293
    %v1295 = vmul.f32 1.0, %v1294
    %v1296 = vtanh.pop %v1289
    %v1297 = vmul.f32 %v1295, %v1037
    %1299 = vrot.lane.b32.xlu0 %v1296, 80
    %v1300 = vpop.permute.xlu0 %1299
    %v1302 = vmul.f32 %v1295, %v1300
    %1304 = vrot.lane.b32.xlu0 %v1302, 16
    %v1305 = vpop.permute.xlu0 %1304
    %v1307 = vadd.f32 %v1297, %v1305
    %v1308 = vtanh.pop %v1307
    %1310 = vrot.lane.b32.xlu0 %v1308, 16
    %v1311 = vpop.permute.xlu0 %1310
    %v1313 = vmul.f32 %v1295, %v1311
    %1315 = vrot.lane.b32.xlu0 %v1218, 64
    %v1316 = vpop.permute.xlu0 %1315
    %v1317 = vsel %vm236, %v1316, 0
    %1319 = vmatprep.subr.mxu0 0.0
    %1320 = vmatpush1.msra.mxu0 0.0
    %1321 = vmatprep.subr.mxu0 0.0
    %1322 = vmatpush1.msra.mxu0 0.0
    %1323 = vmatprep.subr.mxu0 0.0
    %1324 = vmatpush1.msra.mxu0 0.0
    %1325 = vmatprep.subr.mxu0 0.0
    %1326 = vmatpush1.msra.mxu0 0.0
    %1327 = vmatprep.subr.mxu0 0.0
    %1328 = vmatpush1.msra.mxu0 0.0
    %1329 = vmatprep.subr.mxu0 0.0
    %1330 = vmatpush1.msra.mxu0 0.0
    %1331 = vmatprep.subr.mxu0 0.0
    %1332 = vmatpush1.msra.mxu0 0.0
    %1333 = vmatprep.subr.mxu0 0.0
    %1334 = vmatpush1.msra.mxu0 0.0
    %1335 = vmatprep.subr.mxu0 0.0
    %1336 = vmatpush1.msra.mxu0 0.0
    %1337 = vmatprep.subr.mxu0 0.0
    %1338 = vmatpush1.msra.mxu0 0.0
    %1339 = vmatprep.subr.mxu0 0.0
    %1340 = vmatpush1.msra.mxu0 0.0
    %1341 = vmatprep.subr.mxu0 0.0
    %1342 = vmatpush1.msra.mxu0 0.0
    %1343 = vmatprep.subr.mxu0 0.0
    %1344 = vmatpush1.msra.mxu0 %v46
    %1345 = vmatprep.subr.mxu0 0.0
    %1346 = vmatpush1.msra.mxu0 %v45
    %1347 = vmatprep.subr.mxu0 0.0
    %1348 = vmatpush1.msra.mxu0 %v44
    %1349 = vmatprep.subr.mxu0 0.0
    %1350 = vmatpush1.msra.mxu0 %v43
    %1351 = vmatprep.subr.mxu0 0.0
    %1352 = vmatpush2.msra.mxu0 0.0
    %1353 = vmatprep.subr.mxu0 0.0
    %1354 = vmatpush2.msra.mxu0 0.0
    %1355 = vmatprep.subr.mxu0 0.0
    %1356 = vmatpush2.msra.mxu0 0.0
    %1357 = vmatprep.subr.mxu0 0.0
    %1358 = vmatpush2.msra.mxu0 0.0
    %1359 = vmatprep.subr.mxu0 0.0
    %1360 = vmatpush2.msra.mxu0 0.0
    %1361 = vmatprep.subr.mxu0 0.0
    %1362 = vmatpush2.msra.mxu0 0.0
    %1363 = vmatprep.subr.mxu0 0.0
    %1364 = vmatpush2.msra.mxu0 0.0
    %1365 = vmatprep.subr.mxu0 0.0
    %1366 = vmatpush2.msra.mxu0 0.0
    %1367 = vmatprep.subr.mxu0 0.0
    %1368 = vmatpush2.msra.mxu0 0.0
    %1369 = vmatprep.subr.mxu0 0.0
    %1370 = vmatpush2.msra.mxu0 0.0
    %1371 = vmatprep.subr.mxu0 0.0
    %1372 = vmatpush2.msra.mxu0 0.0
    %1373 = vmatprep.subr.mxu0 0.0
    %1374 = vmatpush2.msra.mxu0 0.0
    %1375 = vmatprep.subr.mxu0 0.0
    %1376 = vmatpush2.msra.mxu0 0.0
    %1377 = vmatprep.subr.mxu0 0.0
    %1378 = vmatpush2.msra.mxu0 0.0
    %1379 = vmatprep.subr.mxu0 0.0
    %1380 = vmatpush2.msra.mxu0 0.0
    %1381 = vmatprep.subr.mxu0 0.0
    %1382 = vmatpush2.msra.mxu0 0.0
    %1383 = vmatprep.mubr.f32.mxu0 0.0
    %1384 = vmatmul.mubr.f32.gmra.mxu0 %v1317
    %v1385 = vpop.f32.mrf.mxu0
    %v1386 = vadd.f32 0.0, %v1385
    %v1387 = vpop.f32.mrf.mxu0
    %1388 = vdwg.mxu0
    %1390 = vrot.lane.b32.xlu0 %v1313, 96
    %v1391 = vpop.permute.xlu0 %1390
    %v1392 = vsel %vm137, %v1391, 0
    %1394 = vmatprep.subr.mxu0 0.0
    %1395 = vmatpush1.msra.mxu0 0.0
    %1396 = vmatprep.subr.mxu0 0.0
    %1397 = vmatpush1.msra.mxu0 0.0
    %1398 = vmatprep.subr.mxu0 0.0
    %1399 = vmatpush1.msra.mxu0 0.0
    %1400 = vmatprep.subr.mxu0 0.0
    %1401 = vmatpush1.msra.mxu0 0.0
    %1402 = vmatprep.subr.mxu0 0.0
    %1403 = vmatpush1.msra.mxu0 0.0
    %1404 = vmatprep.subr.mxu0 0.0
    %1405 = vmatpush1.msra.mxu0 0.0
    %1406 = vmatprep.subr.mxu0 0.0
    %1407 = vmatpush1.msra.mxu0 0.0
    %1408 = vmatprep.subr.mxu0 0.0
    %1409 = vmatpush1.msra.mxu0 0.0
    %1410 = vmatprep.subr.mxu0 0.0
    %1411 = vmatpush1.msra.mxu0 0.0
    %1412 = vmatprep.subr.mxu0 0.0
    %1413 = vmatpush1.msra.mxu0 0.0
    %1414 = vmatprep.subr.mxu0 0.0
    %1415 = vmatpush1.msra.mxu0 0.0
    %1416 = vmatprep.subr.mxu0 0.0
    %1417 = vmatpush1.msra.mxu0 0.0
    %1418 = vmatprep.subr.mxu0 0.0
    %1419 = vmatpush1.msra.mxu0 0.0
    %1420 = vmatprep.subr.mxu0 0.0
    %1421 = vmatpush1.msra.mxu0 0.0
    %1422 = vmatprep.subr.mxu0 0.0
    %1423 = vmatpush1.msra.mxu0 %v42
    %1424 = vmatprep.subr.mxu0 0.0
    %1425 = vmatpush1.msra.mxu0 %v41
    %1426 = vmatprep.subr.mxu0 0.0
    %1427 = vmatpush2.msra.mxu0 0.0
    %1428 = vmatprep.subr.mxu0 0.0
    %1429 = vmatpush2.msra.mxu0 0.0
    %1430 = vmatprep.subr.mxu0 0.0
    %1431 = vmatpush2.msra.mxu0 0.0
    %1432 = vmatprep.subr.mxu0 0.0
    %1433 = vmatpush2.msra.mxu0 0.0
    %1434 = vmatprep.subr.mxu0 0.0
    %1435 = vmatpush2.msra.mxu0 0.0
    %1436 = vmatprep.subr.mxu0 0.0
    %1437 = vmatpush2.msra.mxu0 0.0
    %1438 = vmatprep.subr.mxu0 0.0
    %1439 = vmatpush2.msra.mxu0 0.0
    %1440 = vmatprep.subr.mxu0 0.0
    %1441 = vmatpush2.msra.mxu0 0.0
    %1442 = vmatprep.subr.mxu0 0.0
    %1443 = vmatpush2.msra.mxu0 0.0
    %1444 = vmatprep.subr.mxu0 0.0
    %1445 = vmatpush2.msra.mxu0 0.0
    %1446 = vmatprep.subr.mxu0 0.0
    %1447 = vmatpush2.msra.mxu0 0.0
    %1448 = vmatprep.subr.mxu0 0.0
    %1449 = vmatpush2.msra.mxu0 0.0
    %1450 = vmatprep.subr.mxu0 0.0
    %1451 = vmatpush2.msra.mxu0 0.0
    %1452 = vmatprep.subr.mxu0 0.0
    %1453 = vmatpush2.msra.mxu0 0.0
    %1454 = vmatprep.subr.mxu0 0.0
    %1455 = vmatpush2.msra.mxu0 0.0
    %1456 = vmatprep.subr.mxu0 0.0
    %1457 = vmatpush2.msra.mxu0 0.0
    %1458 = vmatprep.mubr.f32.mxu0 0.0
    %1459 = vmatmul.mubr.f32.gmra.mxu0 %v1392
    %v1460 = vpop.f32.mrf.mxu0
    %v1461 = vadd.f32 %v1386, %v1460
    %v1462 = vpop.f32.mrf.mxu0
    %1463 = vdwg.mxu0
    %v1464 = vadd.f32 %v1461, %v136
    %v1465 = vxor.u32 %v1464, 2147483648
    %v1466 = vmul.f32 %v1465, 1.442695
    %v1467 = vpow.pop %v1466
    %v1468 = vadd.f32 %v1467, 1.0
    %v1469 = vrcp.pop %v1468
    %v1470 = vmul.f32 1.0, %v1469
    %v1471 = vtanh.pop %v1464
    %v1472 = vmul.f32 %v1470, %v1212
    %1474 = vrot.lane.b32.xlu0 %v1471, 32
    %v1475 = vpop.permute.xlu0 %1474
    %v1477 = vmul.f32 %v1470, %v1475
    %1479 = vrot.lane.b32.xlu0 %v1477, 32
    %v1480 = vpop.permute.xlu0 %1479
    %v1482 = vadd.f32 %v1472, %v1480
    %v1483 = vtanh.pop %v1482
    %1485 = vrot.lane.b32.xlu0 %v1483, 32
    %v1486 = vpop.permute.xlu0 %1485
    %v1488 = vmul.f32 %v1470, %v1486
    %1489 = vmatprep.subr.mxu0 0.0
    %1490 = vmatpush1.msra.mxu0 0.0
    %1491 = vmatprep.subr.mxu0 0.0
    %1492 = vmatpush1.msra.mxu0 0.0
    %1493 = vmatprep.subr.mxu0 0.0
    %1494 = vmatpush1.msra.mxu0 0.0
    %1495 = vmatprep.subr.mxu0 0.0
    %1496 = vmatpush1.msra.mxu0 0.0
    %1497 = vmatprep.subr.mxu0 0.0
    %1498 = vmatpush1.msra.mxu0 0.0
    %1499 = vmatprep.subr.mxu0 0.0
    %1500 = vmatpush1.msra.mxu0 0.0
    %1501 = vmatprep.subr.mxu0 0.0
    %1502 = vmatpush1.msra.mxu0 0.0
    %1503 = vmatprep.subr.mxu0 0.0
    %1504 = vmatpush1.msra.mxu0 0.0
    %1505 = vmatprep.subr.mxu0 0.0
    %1506 = vmatpush1.msra.mxu0 0.0
    %1507 = vmatprep.subr.mxu0 0.0
    %1508 = vmatpush1.msra.mxu0 0.0
    %1509 = vmatprep.subr.mxu0 0.0
    %1510 = vmatpush1.msra.mxu0 0.0
    %1511 = vmatprep.subr.mxu0 0.0
    %1512 = vmatpush1.msra.mxu0 0.0
    %1513 = vmatprep.subr.mxu0 0.0
    %1514 = vmatpush1.msra.mxu0 0.0
    %1515 = vmatprep.subr.mxu0 0.0
    %1516 = vmatpush1.msra.mxu0 0.0
    %1517 = vmatprep.subr.mxu0 0.0
    %1518 = vmatpush1.msra.mxu0 %v40
    %1519 = vmatprep.subr.mxu0 0.0
    %1520 = vmatpush1.msra.mxu0 %v39
    %1521 = vmatprep.subr.mxu0 0.0
    %1522 = vmatpush2.msra.mxu0 0.0
    %1523 = vmatprep.subr.mxu0 0.0
    %1524 = vmatpush2.msra.mxu0 0.0
    %1525 = vmatprep.subr.mxu0 0.0
    %1526 = vmatpush2.msra.mxu0 0.0
    %1527 = vmatprep.subr.mxu0 0.0
    %1528 = vmatpush2.msra.mxu0 0.0
    %1529 = vmatprep.subr.mxu0 0.0
    %1530 = vmatpush2.msra.mxu0 0.0
    %1531 = vmatprep.subr.mxu0 0.0
    %1532 = vmatpush2.msra.mxu0 0.0
    %1533 = vmatprep.subr.mxu0 0.0
    %1534 = vmatpush2.msra.mxu0 0.0
    %1535 = vmatprep.subr.mxu0 0.0
    %1536 = vmatpush2.msra.mxu0 0.0
    %1537 = vmatprep.subr.mxu0 0.0
    %1538 = vmatpush2.msra.mxu0 0.0
    %1539 = vmatprep.subr.mxu0 0.0
    %1540 = vmatpush2.msra.mxu0 0.0
    %1541 = vmatprep.subr.mxu0 0.0
    %1542 = vmatpush2.msra.mxu0 0.0
    %1543 = vmatprep.subr.mxu0 0.0
    %1544 = vmatpush2.msra.mxu0 0.0
    %1545 = vmatprep.subr.mxu0 0.0
    %1546 = vmatpush2.msra.mxu0 0.0
    %1547 = vmatprep.subr.mxu0 0.0
    %1548 = vmatpush2.msra.mxu0 0.0
    %1549 = vmatprep.subr.mxu0 0.0
    %1550 = vmatpush2.msra.mxu0 0.0
    %1551 = vmatprep.subr.mxu0 0.0
    %1552 = vmatpush2.msra.mxu0 0.0
    %1553 = vmatprep.mubr.f32.mxu0 0.0
    %1554 = vmatmul.mubr.f32.gmra.mxu0 %v1392
    %v1555 = vpop.f32.mrf.mxu0
    %v1556 = vadd.f32 0.0, %v1555
    %v1557 = vpop.f32.mrf.mxu0
    %1558 = vdwg.mxu0
    %v1559 = vadd.f32 %v130, %v1556
    %v1560 = vxor.u32 %v1559, 2147483648
    %v1561 = vmul.f32 %v1560, 1.442695
    %v1562 = vpow.pop %v1561
    %v1563 = vadd.f32 %v1562, 1.0
    %v1564 = vrcp.pop %v1563
    %v1565 = vmul.f32 1.0, %v1564
    %v1566 = vtanh.pop %v1559
    %v1567 = vmul.f32 %v1565, %v1307
    %1569 = vrot.lane.b32.xlu0 %v1566, 80
    %v1570 = vpop.permute.xlu0 %1569
    %v1572 = vmul.f32 %v1565, %v1570
    %1574 = vrot.lane.b32.xlu0 %v1572, 16
    %v1575 = vpop.permute.xlu0 %1574
    %v1577 = vadd.f32 %v1567, %v1575
    %v1578 = vtanh.pop %v1577
    %1580 = vrot.lane.b32.xlu0 %v1578, 16
    %v1581 = vpop.permute.xlu0 %1580
    %v1583 = vmul.f32 %v1565, %v1581
    %1585 = vrot.lane.b32.xlu0 %v1488, 64
    %v1586 = vpop.permute.xlu0 %1585
    %v1587 = vsel %vm236, %v1586, 0
    %1589 = vmatprep.subr.mxu0 0.0
    %1590 = vmatpush1.msra.mxu0 0.0
    %1591 = vmatprep.subr.mxu0 0.0
    %1592 = vmatpush1.msra.mxu0 0.0
    %1593 = vmatprep.subr.mxu0 0.0
    %1594 = vmatpush1.msra.mxu0 0.0
    %1595 = vmatprep.subr.mxu0 0.0
    %1596 = vmatpush1.msra.mxu0 0.0
    %1597 = vmatprep.subr.mxu0 0.0
    %1598 = vmatpush1.msra.mxu0 0.0
    %1599 = vmatprep.subr.mxu0 0.0
    %1600 = vmatpush1.msra.mxu0 0.0
    %1601 = vmatprep.subr.mxu0 0.0
    %1602 = vmatpush1.msra.mxu0 0.0
    %1603 = vmatprep.subr.mxu0 0.0
    %1604 = vmatpush1.msra.mxu0 0.0
    %1605 = vmatprep.subr.mxu0 0.0
    %1606 = vmatpush1.msra.mxu0 0.0
    %1607 = vmatprep.subr.mxu0 0.0
    %1608 = vmatpush1.msra.mxu0 0.0
    %1609 = vmatprep.subr.mxu0 0.0
    %1610 = vmatpush1.msra.mxu0 0.0
    %1611 = vmatprep.subr.mxu0 0.0
    %1612 = vmatpush1.msra.mxu0 0.0
    %1613 = vmatprep.subr.mxu0 0.0
    %1614 = vmatpush1.msra.mxu0 %v46
    %1615 = vmatprep.subr.mxu0 0.0
    %1616 = vmatpush1.msra.mxu0 %v45
    %1617 = vmatprep.subr.mxu0 0.0
    %1618 = vmatpush1.msra.mxu0 %v44
    %1619 = vmatprep.subr.mxu0 0.0
    %1620 = vmatpush1.msra.mxu0 %v43
    %1621 = vmatprep.subr.mxu0 0.0
    %1622 = vmatpush2.msra.mxu0 0.0
    %1623 = vmatprep.subr.mxu0 0.0
    %1624 = vmatpush2.msra.mxu0 0.0
    %1625 = vmatprep.subr.mxu0 0.0
    %1626 = vmatpush2.msra.mxu0 0.0
    %1627 = vmatprep.subr.mxu0 0.0
    %1628 = vmatpush2.msra.mxu0 0.0
    %1629 = vmatprep.subr.mxu0 0.0
    %1630 = vmatpush2.msra.mxu0 0.0
    %1631 = vmatprep.subr.mxu0 0.0
    %1632 = vmatpush2.msra.mxu0 0.0
    %1633 = vmatprep.subr.mxu0 0.0
    %1634 = vmatpush2.msra.mxu0 0.0
    %1635 = vmatprep.subr.mxu0 0.0
    %1636 = vmatpush2.msra.mxu0 0.0
    %1637 = vmatprep.subr.mxu0 0.0
    %1638 = vmatpush2.msra.mxu0 0.0
    %1639 = vmatprep.subr.mxu0 0.0
    %1640 = vmatpush2.msra.mxu0 0.0
    %1641 = vmatprep.subr.mxu0 0.0
    %1642 = vmatpush2.msra.mxu0 0.0
    %1643 = vmatprep.subr.mxu0 0.0
    %1644 = vmatpush2.msra.mxu0 0.0
    %1645 = vmatprep.subr.mxu0 0.0
    %1646 = vmatpush2.msra.mxu0 0.0
    %1647 = vmatprep.subr.mxu0 0.0
    %1648 = vmatpush2.msra.mxu0 0.0
    %1649 = vmatprep.subr.mxu0 0.0
    %1650 = vmatpush2.msra.mxu0 0.0
    %1651 = vmatprep.subr.mxu0 0.0
    %1652 = vmatpush2.msra.mxu0 0.0
    %1653 = vmatprep.mubr.f32.mxu0 0.0
    %1654 = vmatmul.mubr.f32.gmra.mxu0 %v1587
    %v1655 = vpop.f32.mrf.mxu0
    %v1656 = vadd.f32 0.0, %v1655
    %v1657 = vpop.f32.mrf.mxu0
    %1658 = vdwg.mxu0
    %1660 = vrot.lane.b32.xlu0 %v1583, 96
    %v1661 = vpop.permute.xlu0 %1660
    %v1662 = vsel %vm137, %v1661, 0
    %1664 = vmatprep.subr.mxu0 0.0
    %1665 = vmatpush1.msra.mxu0 0.0
    %1666 = vmatprep.subr.mxu0 0.0
    %1667 = vmatpush1.msra.mxu0 0.0
    %1668 = vmatprep.subr.mxu0 0.0
    %1669 = vmatpush1.msra.mxu0 0.0
    %1670 = vmatprep.subr.mxu0 0.0
    %1671 = vmatpush1.msra.mxu0 0.0
    %1672 = vmatprep.subr.mxu0 0.0
    %1673 = vmatpush1.msra.mxu0 0.0
    %1674 = vmatprep.subr.mxu0 0.0
    %1675 = vmatpush1.msra.mxu0 0.0
    %1676 = vmatprep.subr.mxu0 0.0
    %1677 = vmatpush1.msra.mxu0 0.0
    %1678 = vmatprep.subr.mxu0 0.0
    %1679 = vmatpush1.msra.mxu0 0.0
    %1680 = vmatprep.subr.mxu0 0.0
    %1681 = vmatpush1.msra.mxu0 0.0
    %1682 = vmatprep.subr.mxu0 0.0
    %1683 = vmatpush1.msra.mxu0 0.0
    %1684 = vmatprep.subr.mxu0 0.0
    %1685 = vmatpush1.msra.mxu0 0.0
    %1686 = vmatprep.subr.mxu0 0.0
    %1687 = vmatpush1.msra.mxu0 0.0
    %1688 = vmatprep.subr.mxu0 0.0
    %1689 = vmatpush1.msra.mxu0 0.0
    %1690 = vmatprep.subr.mxu0 0.0
    %1691 = vmatpush1.msra.mxu0 0.0
    %1692 = vmatprep.subr.mxu0 0.0
    %1693 = vmatpush1.msra.mxu0 %v42
    %1694 = vmatprep.subr.mxu0 0.0
    %1695 = vmatpush1.msra.mxu0 %v41
    %1696 = vmatprep.subr.mxu0 0.0
    %1697 = vmatpush2.msra.mxu0 0.0
    %1698 = vmatprep.subr.mxu0 0.0
    %1699 = vmatpush2.msra.mxu0 0.0
    %1700 = vmatprep.subr.mxu0 0.0
    %1701 = vmatpush2.msra.mxu0 0.0
    %1702 = vmatprep.subr.mxu0 0.0
    %1703 = vmatpush2.msra.mxu0 0.0
    %1704 = vmatprep.subr.mxu0 0.0
    %1705 = vmatpush2.msra.mxu0 0.0
    %1706 = vmatprep.subr.mxu0 0.0
    %1707 = vmatpush2.msra.mxu0 0.0
    %1708 = vmatprep.subr.mxu0 0.0
    %1709 = vmatpush2.msra.mxu0 0.0
    %1710 = vmatprep.subr.mxu0 0.0
    %1711 = vmatpush2.msra.mxu0 0.0
    %1712 = vmatprep.subr.mxu0 0.0
    %1713 = vmatpush2.msra.mxu0 0.0
    %1714 = vmatprep.subr.mxu0 0.0
    %1715 = vmatpush2.msra.mxu0 0.0
    %1716 = vmatprep.subr.mxu0 0.0
    %1717 = vmatpush2.msra.mxu0 0.0
    %1718 = vmatprep.subr.mxu0 0.0
    %1719 = vmatpush2.msra.mxu0 0.0
    %1720 = vmatprep.subr.mxu0 0.0
    %1721 = vmatpush2.msra.mxu0 0.0
    %1722 = vmatprep.subr.mxu0 0.0
    %1723 = vmatpush2.msra.mxu0 0.0
    %1724 = vmatprep.subr.mxu0 0.0
    %1725 = vmatpush2.msra.mxu0 0.0
    %1726 = vmatprep.subr.mxu0 0.0
    %1727 = vmatpush2.msra.mxu0 0.0
    %1728 = vmatprep.mubr.f32.mxu0 0.0
    %1729 = vmatmul.mubr.f32.gmra.mxu0 %v1662
    %v1730 = vpop.f32.mrf.mxu0
    %v1731 = vadd.f32 %v1656, %v1730
    %v1732 = vpop.f32.mrf.mxu0
    %1733 = vdwg.mxu0
    %v1734 = vadd.f32 %v1731, %v136
    %v1735 = vxor.u32 %v1734, 2147483648
    %v1736 = vmul.f32 %v1735, 1.442695
    %v1737 = vpow.pop %v1736
    %v1738 = vadd.f32 %v1737, 1.0
    %v1739 = vrcp.pop %v1738
    %v1740 = vmul.f32 1.0, %v1739
    %v1741 = vtanh.pop %v1734
    %v1742 = vmul.f32 %v1740, %v1482
    %1744 = vrot.lane.b32.xlu0 %v1741, 32
    %v1745 = vpop.permute.xlu0 %1744
    %v1747 = vmul.f32 %v1740, %v1745
    %1749 = vrot.lane.b32.xlu0 %v1747, 32
    %v1750 = vpop.permute.xlu0 %1749
    %v1752 = vadd.f32 %v1742, %v1750
    %v1753 = vtanh.pop %v1752
    %1755 = vrot.lane.b32.xlu0 %v1753, 32
    %v1756 = vpop.permute.xlu0 %1755
    %v1758 = vmul.f32 %v1740, %v1756
    %1759 = vmatprep.subr.mxu0 0.0
    %1760 = vmatpush1.msra.mxu0 0.0
    %1761 = vmatprep.subr.mxu0 0.0
    %1762 = vmatpush1.msra.mxu0 0.0
    %1763 = vmatprep.subr.mxu0 0.0
    %1764 = vmatpush1.msra.mxu0 0.0
    %1765 = vmatprep.subr.mxu0 0.0
    %1766 = vmatpush1.msra.mxu0 0.0
    %1767 = vmatprep.subr.mxu0 0.0
    %1768 = vmatpush1.msra.mxu0 0.0
    %1769 = vmatprep.subr.mxu0 0.0
    %1770 = vmatpush1.msra.mxu0 0.0
    %1771 = vmatprep.subr.mxu0 0.0
    %1772 = vmatpush1.msra.mxu0 0.0
    %1773 = vmatprep.subr.mxu0 0.0
    %1774 = vmatpush1.msra.mxu0 0.0
    %1775 = vmatprep.subr.mxu0 0.0
    %1776 = vmatpush1.msra.mxu0 0.0
    %1777 = vmatprep.subr.mxu0 0.0
    %1778 = vmatpush1.msra.mxu0 0.0
    %1779 = vmatprep.subr.mxu0 0.0
    %1780 = vmatpush1.msra.mxu0 0.0
    %1781 = vmatprep.subr.mxu0 0.0
    %1782 = vmatpush1.msra.mxu0 0.0
    %1783 = vmatprep.subr.mxu0 0.0
    %1784 = vmatpush1.msra.mxu0 0.0
    %1785 = vmatprep.subr.mxu0 0.0
    %1786 = vmatpush1.msra.mxu0 0.0
    %1787 = vmatprep.subr.mxu0 0.0
    %1788 = vmatpush1.msra.mxu0 %v40
    %1789 = vmatprep.subr.mxu0 0.0
    %1790 = vmatpush1.msra.mxu0 %v39
    %1791 = vmatprep.subr.mxu0 0.0
    %1792 = vmatpush2.msra.mxu0 0.0
    %1793 = vmatprep.subr.mxu0 0.0
    %1794 = vmatpush2.msra.mxu0 0.0
    %1795 = vmatprep.subr.mxu0 0.0
    %1796 = vmatpush2.msra.mxu0 0.0
    %1797 = vmatprep.subr.mxu0 0.0
    %1798 = vmatpush2.msra.mxu0 0.0
    %1799 = vmatprep.subr.mxu0 0.0
    %1800 = vmatpush2.msra.mxu0 0.0
    %1801 = vmatprep.subr.mxu0 0.0
    %1802 = vmatpush2.msra.mxu0 0.0
    %1803 = vmatprep.subr.mxu0 0.0
    %1804 = vmatpush2.msra.mxu0 0.0
    %1805 = vmatprep.subr.mxu0 0.0
    %1806 = vmatpush2.msra.mxu0 0.0
    %1807 = vmatprep.subr.mxu0 0.0
    %1808 = vmatpush2.msra.mxu0 0.0
    %1809 = vmatprep.subr.mxu0 0.0
    %1810 = vmatpush2.msra.mxu0 0.0
    %1811 = vmatprep.subr.mxu0 0.0
    %1812 = vmatpush2.msra.mxu0 0.0
    %1813 = vmatprep.subr.mxu0 0.0
    %1814 = vmatpush2.msra.mxu0 0.0
    %1815 = vmatprep.subr.mxu0 0.0
    %1816 = vmatpush2.msra.mxu0 0.0
    %1817 = vmatprep.subr.mxu0 0.0
    %1818 = vmatpush2.msra.mxu0 0.0
    %1819 = vmatprep.subr.mxu0 0.0
    %1820 = vmatpush2.msra.mxu0 0.0
    %1821 = vmatprep.subr.mxu0 0.0
    %1822 = vmatpush2.msra.mxu0 0.0
    %1823 = vmatprep.mubr.f32.mxu0 0.0
    %1824 = vmatmul.mubr.f32.gmra.mxu0 %v1662
    %v1825 = vpop.f32.mrf.mxu0
    %v1826 = vadd.f32 0.0, %v1825
    %v1827 = vpop.f32.mrf.mxu0
    %1828 = vdwg.mxu0
    %v1829 = vadd.f32 %v130, %v1826
    %v1830 = vxor.u32 %v1829, 2147483648
    %v1831 = vmul.f32 %v1830, 1.442695
    %v1832 = vpow.pop %v1831
    %v1833 = vadd.f32 %v1832, 1.0
    %v1834 = vrcp.pop %v1833
    %v1835 = vmul.f32 1.0, %v1834
    %v1836 = vtanh.pop %v1829
    %v1837 = vmul.f32 %v1835, %v1577
    %1839 = vrot.lane.b32.xlu0 %v1836, 80
    %v1840 = vpop.permute.xlu0 %1839
    %v1842 = vmul.f32 %v1835, %v1840
    %1844 = vrot.lane.b32.xlu0 %v1842, 16
    %v1845 = vpop.permute.xlu0 %1844
    %v1847 = vadd.f32 %v1837, %v1845
    %v1848 = vtanh.pop %v1847
    %1850 = vrot.lane.b32.xlu0 %v1848, 16
    %v1851 = vpop.permute.xlu0 %1850
    %v1853 = vmul.f32 %v1835, %v1851
    %1855 = vrot.lane.b32.xlu0 %v1758, 64
    %v1856 = vpop.permute.xlu0 %1855
    %v1857 = vsel %vm236, %v1856, 0
    %1859 = vmatprep.subr.mxu0 0.0
    %1860 = vmatpush1.msra.mxu0 0.0
    %1861 = vmatprep.subr.mxu0 0.0
    %1862 = vmatpush1.msra.mxu0 0.0
    %1863 = vmatprep.subr.mxu0 0.0
    %1864 = vmatpush1.msra.mxu0 0.0
    %1865 = vmatprep.subr.mxu0 0.0
    %1866 = vmatpush1.msra.mxu0 0.0
    %1867 = vmatprep.subr.mxu0 0.0
    %1868 = vmatpush1.msra.mxu0 0.0
    %1869 = vmatprep.subr.mxu0 0.0
    %1870 = vmatpush1.msra.mxu0 0.0
    %1871 = vmatprep.subr.mxu0 0.0
    %1872 = vmatpush1.msra.mxu0 0.0
    %1873 = vmatprep.subr.mxu0 0.0
    %1874 = vmatpush1.msra.mxu0 0.0
    %1875 = vmatprep.subr.mxu0 0.0
    %1876 = vmatpush1.msra.mxu0 0.0
    %1877 = vmatprep.subr.mxu0 0.0
    %1878 = vmatpush1.msra.mxu0 0.0
    %1879 = vmatprep.subr.mxu0 0.0
    %1880 = vmatpush1.msra.mxu0 0.0
    %1881 = vmatprep.subr.mxu0 0.0
    %1882 = vmatpush1.msra.mxu0 0.0
    %1883 = vmatprep.subr.mxu0 0.0
    %1884 = vmatpush1.msra.mxu0 %v46
    %1885 = vmatprep.subr.mxu0 0.0
    %1886 = vmatpush1.msra.mxu0 %v45
    %1887 = vmatprep.subr.mxu0 0.0
    %1888 = vmatpush1.msra.mxu0 %v44
    %1889 = vmatprep.subr.mxu0 0.0
    %1890 = vmatpush1.msra.mxu0 %v43
    %1891 = vmatprep.subr.mxu0 0.0
    %1892 = vmatpush2.msra.mxu0 0.0
    %1893 = vmatprep.subr.mxu0 0.0
    %1894 = vmatpush2.msra.mxu0 0.0
    %1895 = vmatprep.subr.mxu0 0.0
    %1896 = vmatpush2.msra.mxu0 0.0
    %1897 = vmatprep.subr.mxu0 0.0
    %1898 = vmatpush2.msra.mxu0 0.0
    %1899 = vmatprep.subr.mxu0 0.0
    %1900 = vmatpush2.msra.mxu0 0.0
    %1901 = vmatprep.subr.mxu0 0.0
    %1902 = vmatpush2.msra.mxu0 0.0
    %1903 = vmatprep.subr.mxu0 0.0
    %1904 = vmatpush2.msra.mxu0 0.0
    %1905 = vmatprep.subr.mxu0 0.0
    %1906 = vmatpush2.msra.mxu0 0.0
    %1907 = vmatprep.subr.mxu0 0.0
    %1908 = vmatpush2.msra.mxu0 0.0
    %1909 = vmatprep.subr.mxu0 0.0
    %1910 = vmatpush2.msra.mxu0 0.0
    %1911 = vmatprep.subr.mxu0 0.0
    %1912 = vmatpush2.msra.mxu0 0.0
    %1913 = vmatprep.subr.mxu0 0.0
    %1914 = vmatpush2.msra.mxu0 0.0
    %1915 = vmatprep.subr.mxu0 0.0
    %1916 = vmatpush2.msra.mxu0 0.0
    %1917 = vmatprep.subr.mxu0 0.0
    %1918 = vmatpush2.msra.mxu0 0.0
    %1919 = vmatprep.subr.mxu0 0.0
    %1920 = vmatpush2.msra.mxu0 0.0
    %1921 = vmatprep.subr.mxu0 0.0
    %1922 = vmatpush2.msra.mxu0 0.0
    %1923 = vmatprep.mubr.f32.mxu0 0.0
    %1924 = vmatmul.mubr.f32.gmra.mxu0 %v1857
    %v1925 = vpop.f32.mrf.mxu0
    %v1926 = vadd.f32 0.0, %v1925
    %v1927 = vpop.f32.mrf.mxu0
    %1928 = vdwg.mxu0
    %1930 = vrot.lane.b32.xlu0 %v1853, 96
    %v1931 = vpop.permute.xlu0 %1930
    %v1932 = vsel %vm137, %v1931, 0
    %1934 = vmatprep.subr.mxu0 0.0
    %1935 = vmatpush1.msra.mxu0 0.0
    %1936 = vmatprep.subr.mxu0 0.0
    %1937 = vmatpush1.msra.mxu0 0.0
    %1938 = vmatprep.subr.mxu0 0.0
    %1939 = vmatpush1.msra.mxu0 0.0
    %1940 = vmatprep.subr.mxu0 0.0
    %1941 = vmatpush1.msra.mxu0 0.0
    %1942 = vmatprep.subr.mxu0 0.0
    %1943 = vmatpush1.msra.mxu0 0.0
    %1944 = vmatprep.subr.mxu0 0.0
    %1945 = vmatpush1.msra.mxu0 0.0
    %1946 = vmatprep.subr.mxu0 0.0
    %1947 = vmatpush1.msra.mxu0 0.0
    %1948 = vmatprep.subr.mxu0 0.0
    %1949 = vmatpush1.msra.mxu0 0.0
    %1950 = vmatprep.subr.mxu0 0.0
    %1951 = vmatpush1.msra.mxu0 0.0
    %1952 = vmatprep.subr.mxu0 0.0
    %1953 = vmatpush1.msra.mxu0 0.0
    %1954 = vmatprep.subr.mxu0 0.0
    %1955 = vmatpush1.msra.mxu0 0.0
    %1956 = vmatprep.subr.mxu0 0.0
    %1957 = vmatpush1.msra.mxu0 0.0
    %1958 = vmatprep.subr.mxu0 0.0
    %1959 = vmatpush1.msra.mxu0 0.0
    %1960 = vmatprep.subr.mxu0 0.0
    %1961 = vmatpush1.msra.mxu0 0.0
    %1962 = vmatprep.subr.mxu0 0.0
    %1963 = vmatpush1.msra.mxu0 %v42
    %1964 = vmatprep.subr.mxu0 0.0
    %1965 = vmatpush1.msra.mxu0 %v41
    %1966 = vmatprep.subr.mxu0 0.0
    %1967 = vmatpush2.msra.mxu0 0.0
    %1968 = vmatprep.subr.mxu0 0.0
    %1969 = vmatpush2.msra.mxu0 0.0
    %1970 = vmatprep.subr.mxu0 0.0
    %1971 = vmatpush2.msra.mxu0 0.0
    %1972 = vmatprep.subr.mxu0 0.0
    %1973 = vmatpush2.msra.mxu0 0.0
    %1974 = vmatprep.subr.mxu0 0.0
    %1975 = vmatpush2.msra.mxu0 0.0
    %1976 = vmatprep.subr.mxu0 0.0
    %1977 = vmatpush2.msra.mxu0 0.0
    %1978 = vmatprep.subr.mxu0 0.0
    %1979 = vmatpush2.msra.mxu0 0.0
    %1980 = vmatprep.subr.mxu0 0.0
    %1981 = vmatpush2.msra.mxu0 0.0
    %1982 = vmatprep.subr.mxu0 0.0
    %1983 = vmatpush2.msra.mxu0 0.0
    %1984 = vmatprep.subr.mxu0 0.0
    %1985 = vmatpush2.msra.mxu0 0.0
    %1986 = vmatprep.subr.mxu0 0.0
    %1987 = vmatpush2.msra.mxu0 0.0
    %1988 = vmatprep.subr.mxu0 0.0
    %1989 = vmatpush2.msra.mxu0 0.0
    %1990 = vmatprep.subr.mxu0 0.0
    %1991 = vmatpush2.msra.mxu0 0.0
    %1992 = vmatprep.subr.mxu0 0.0
    %1993 = vmatpush2.msra.mxu0 0.0
    %1994 = vmatprep.subr.mxu0 0.0
    %1995 = vmatpush2.msra.mxu0 0.0
    %1996 = vmatprep.subr.mxu0 0.0
    %1997 = vmatpush2.msra.mxu0 0.0
    %1998 = vmatprep.mubr.f32.mxu0 0.0
    %1999 = vmatmul.mubr.f32.gmra.mxu0 %v1932
    %v2000 = vpop.f32.mrf.mxu0
    %v2001 = vadd.f32 %v1926, %v2000
    %v2002 = vpop.f32.mrf.mxu0
    %2003 = vdwg.mxu0
    %v2004 = vadd.f32 %v2001, %v136
    %v2005 = vxor.u32 %v2004, 2147483648
    %v2006 = vmul.f32 %v2005, 1.442695
    %v2007 = vpow.pop %v2006
    %v2008 = vadd.f32 %v2007, 1.0
    %v2009 = vrcp.pop %v2008
    %v2010 = vmul.f32 1.0, %v2009
    %v2011 = vtanh.pop %v2004
    %v2012 = vmul.f32 %v2010, %v1752
    %2014 = vrot.lane.b32.xlu0 %v2011, 32
    %v2015 = vpop.permute.xlu0 %2014
    %v2017 = vmul.f32 %v2010, %v2015
    %2019 = vrot.lane.b32.xlu0 %v2017, 32
    %v2020 = vpop.permute.xlu0 %2019
    %v2022 = vadd.f32 %v2012, %v2020
    %v2023 = vtanh.pop %v2022
    %2025 = vrot.lane.b32.xlu0 %v2023, 32
    %v2026 = vpop.permute.xlu0 %2025
    %v2028 = vmul.f32 %v2010, %v2026
    %2029 = vmatprep.subr.mxu0 0.0
    %2030 = vmatpush1.msra.mxu0 0.0
    %2031 = vmatprep.subr.mxu0 0.0
    %2032 = vmatpush1.msra.mxu0 0.0
    %2033 = vmatprep.subr.mxu0 0.0
    %2034 = vmatpush1.msra.mxu0 0.0
    %2035 = vmatprep.subr.mxu0 0.0
    %2036 = vmatpush1.msra.mxu0 0.0
    %2037 = vmatprep.subr.mxu0 0.0
    %2038 = vmatpush1.msra.mxu0 0.0
    %2039 = vmatprep.subr.mxu0 0.0
    %2040 = vmatpush1.msra.mxu0 0.0
    %2041 = vmatprep.subr.mxu0 0.0
    %2042 = vmatpush1.msra.mxu0 0.0
    %2043 = vmatprep.subr.mxu0 0.0
    %2044 = vmatpush1.msra.mxu0 0.0
    %2045 = vmatprep.subr.mxu0 0.0
    %2046 = vmatpush1.msra.mxu0 0.0
    %2047 = vmatprep.subr.mxu0 0.0
    %2048 = vmatpush1.msra.mxu0 0.0
    %2049 = vmatprep.subr.mxu0 0.0
    %2050 = vmatpush1.msra.mxu0 0.0
    %2051 = vmatprep.subr.mxu0 0.0
    %2052 = vmatpush1.msra.mxu0 0.0
    %2053 = vmatprep.subr.mxu0 0.0
    %2054 = vmatpush1.msra.mxu0 0.0
    %2055 = vmatprep.subr.mxu0 0.0
    %2056 = vmatpush1.msra.mxu0 0.0
    %2057 = vmatprep.subr.mxu0 0.0
    %2058 = vmatpush1.msra.mxu0 %v40
    %2059 = vmatprep.subr.mxu0 0.0
    %2060 = vmatpush1.msra.mxu0 %v39
    %2061 = vmatprep.subr.mxu0 0.0
    %2062 = vmatpush2.msra.mxu0 0.0
    %2063 = vmatprep.subr.mxu0 0.0
    %2064 = vmatpush2.msra.mxu0 0.0
    %2065 = vmatprep.subr.mxu0 0.0
    %2066 = vmatpush2.msra.mxu0 0.0
    %2067 = vmatprep.subr.mxu0 0.0
    %2068 = vmatpush2.msra.mxu0 0.0
    %2069 = vmatprep.subr.mxu0 0.0
    %2070 = vmatpush2.msra.mxu0 0.0
    %2071 = vmatprep.subr.mxu0 0.0
    %2072 = vmatpush2.msra.mxu0 0.0
    %2073 = vmatprep.subr.mxu0 0.0
    %2074 = vmatpush2.msra.mxu0 0.0
    %2075 = vmatprep.subr.mxu0 0.0
    %2076 = vmatpush2.msra.mxu0 0.0
    %2077 = vmatprep.subr.mxu0 0.0
    %2078 = vmatpush2.msra.mxu0 0.0
    %2079 = vmatprep.subr.mxu0 0.0
    %2080 = vmatpush2.msra.mxu0 0.0
    %2081 = vmatprep.subr.mxu0 0.0
    %2082 = vmatpush2.msra.mxu0 0.0
    %2083 = vmatprep.subr.mxu0 0.0
    %2084 = vmatpush2.msra.mxu0 0.0
    %2085 = vmatprep.subr.mxu0 0.0
    %2086 = vmatpush2.msra.mxu0 0.0
    %2087 = vmatprep.subr.mxu0 0.0
    %2088 = vmatpush2.msra.mxu0 0.0
    %2089 = vmatprep.subr.mxu0 0.0
    %2090 = vmatpush2.msra.mxu0 0.0
    %2091 = vmatprep.subr.mxu0 0.0
    %2092 = vmatpush2.msra.mxu0 0.0
    %2093 = vmatprep.mubr.f32.mxu0 0.0
    %2094 = vmatmul.mubr.f32.gmra.mxu0 %v1932
    %v2095 = vpop.f32.mrf.mxu0
    %v2096 = vadd.f32 0.0, %v2095
    %v2097 = vpop.f32.mrf.mxu0
    %2098 = vdwg.mxu0
    %v2099 = vadd.f32 %v130, %v2096
    %v2100 = vxor.u32 %v2099, 2147483648
    %v2101 = vmul.f32 %v2100, 1.442695
    %v2102 = vpow.pop %v2101
    %v2103 = vadd.f32 %v2102, 1.0
    %v2104 = vrcp.pop %v2103
    %v2105 = vmul.f32 1.0, %v2104
    %v2106 = vtanh.pop %v2099
    %v2107 = vmul.f32 %v2105, %v1847
    %2109 = vrot.lane.b32.xlu0 %v2106, 80
    %v2110 = vpop.permute.xlu0 %2109
    %v2112 = vmul.f32 %v2105, %v2110
    %2114 = vrot.lane.b32.xlu0 %v2112, 16
    %v2115 = vpop.permute.xlu0 %2114
    %v2117 = vadd.f32 %v2107, %v2115
    %v2118 = vtanh.pop %v2117
    %2120 = vrot.lane.b32.xlu0 %v2118, 16
    %v2121 = vpop.permute.xlu0 %2120
    %v2123 = vmul.f32 %v2105, %v2121
    %2125 = vrot.lane.b32.xlu0 %v2028, 64
    %v2126 = vpop.permute.xlu0 %2125
    %v2127 = vsel %vm236, %v2126, 0
    %2129 = vmatprep.subr.mxu0 0.0
    %2130 = vmatpush1.msra.mxu0 0.0
    %2131 = vmatprep.subr.mxu0 0.0
    %2132 = vmatpush1.msra.mxu0 0.0
    %2133 = vmatprep.subr.mxu0 0.0
    %2134 = vmatpush1.msra.mxu0 0.0
    %2135 = vmatprep.subr.mxu0 0.0
    %2136 = vmatpush1.msra.mxu0 0.0
    %2137 = vmatprep.subr.mxu0 0.0
    %2138 = vmatpush1.msra.mxu0 0.0
    %2139 = vmatprep.subr.mxu0 0.0
    %2140 = vmatpush1.msra.mxu0 0.0
    %2141 = vmatprep.subr.mxu0 0.0
    %2142 = vmatpush1.msra.mxu0 0.0
    %2143 = vmatprep.subr.mxu0 0.0
    %2144 = vmatpush1.msra.mxu0 0.0
    %2145 = vmatprep.subr.mxu0 0.0
    %2146 = vmatpush1.msra.mxu0 0.0
    %2147 = vmatprep.subr.mxu0 0.0
    %2148 = vmatpush1.msra.mxu0 0.0
    %2149 = vmatprep.subr.mxu0 0.0
    %2150 = vmatpush1.msra.mxu0 0.0
    %2151 = vmatprep.subr.mxu0 0.0
    %2152 = vmatpush1.msra.mxu0 0.0
    %2153 = vmatprep.subr.mxu0 0.0
    %2154 = vmatpush1.msra.mxu0 %v46
    %2155 = vmatprep.subr.mxu0 0.0
    %2156 = vmatpush1.msra.mxu0 %v45
    %2157 = vmatprep.subr.mxu0 0.0
    %2158 = vmatpush1.msra.mxu0 %v44
    %2159 = vmatprep.subr.mxu0 0.0
    %2160 = vmatpush1.msra.mxu0 %v43
    %2161 = vmatprep.subr.mxu0 0.0
    %2162 = vmatpush2.msra.mxu0 0.0
    %2163 = vmatprep.subr.mxu0 0.0
    %2164 = vmatpush2.msra.mxu0 0.0
    %2165 = vmatprep.subr.mxu0 0.0
    %2166 = vmatpush2.msra.mxu0 0.0
    %2167 = vmatprep.subr.mxu0 0.0
    %2168 = vmatpush2.msra.mxu0 0.0
    %2169 = vmatprep.subr.mxu0 0.0
    %2170 = vmatpush2.msra.mxu0 0.0
    %2171 = vmatprep.subr.mxu0 0.0
    %2172 = vmatpush2.msra.mxu0 0.0
    %2173 = vmatprep.subr.mxu0 0.0
    %2174 = vmatpush2.msra.mxu0 0.0
    %2175 = vmatprep.subr.mxu0 0.0
    %2176 = vmatpush2.msra.mxu0 0.0
    %2177 = vmatprep.subr.mxu0 0.0
    %2178 = vmatpush2.msra.mxu0 0.0
    %2179 = vmatprep.subr.mxu0 0.0
    %2180 = vmatpush2.msra.mxu0 0.0
    %2181 = vmatprep.subr.mxu0 0.0
    %2182 = vmatpush2.msra.mxu0 0.0
    %2183 = vmatprep.subr.mxu0 0.0
    %2184 = vmatpush2.msra.mxu0 0.0
    %2185 = vmatprep.subr.mxu0 0.0
    %2186 = vmatpush2.msra.mxu0 0.0
    %2187 = vmatprep.subr.mxu0 0.0
    %2188 = vmatpush2.msra.mxu0 0.0
    %2189 = vmatprep.subr.mxu0 0.0
    %2190 = vmatpush2.msra.mxu0 0.0
    %2191 = vmatprep.subr.mxu0 0.0
    %2192 = vmatpush2.msra.mxu0 0.0
    %2193 = vmatprep.mubr.f32.mxu0 0.0
    %2194 = vmatmul.mubr.f32.gmra.mxu0 %v2127
    %v2195 = vpop.f32.mrf.mxu0
    %v2196 = vadd.f32 0.0, %v2195
    %v2197 = vpop.f32.mrf.mxu0
    %2198 = vdwg.mxu0
    %2200 = vrot.lane.b32.xlu0 %v2123, 96
    %v2201 = vpop.permute.xlu0 %2200
    %v2202 = vsel %vm137, %v2201, 0
    %2204 = vmatprep.subr.mxu0 0.0
    %2205 = vmatpush1.msra.mxu0 0.0
    %2206 = vmatprep.subr.mxu0 0.0
    %2207 = vmatpush1.msra.mxu0 0.0
    %2208 = vmatprep.subr.mxu0 0.0
    %2209 = vmatpush1.msra.mxu0 0.0
    %2210 = vmatprep.subr.mxu0 0.0
    %2211 = vmatpush1.msra.mxu0 0.0
    %2212 = vmatprep.subr.mxu0 0.0
    %2213 = vmatpush1.msra.mxu0 0.0
    %2214 = vmatprep.subr.mxu0 0.0
    %2215 = vmatpush1.msra.mxu0 0.0
    %2216 = vmatprep.subr.mxu0 0.0
    %2217 = vmatpush1.msra.mxu0 0.0
    %2218 = vmatprep.subr.mxu0 0.0
    %2219 = vmatpush1.msra.mxu0 0.0
    %2220 = vmatprep.subr.mxu0 0.0
    %2221 = vmatpush1.msra.mxu0 0.0
    %2222 = vmatprep.subr.mxu0 0.0
    %2223 = vmatpush1.msra.mxu0 0.0
    %2224 = vmatprep.subr.mxu0 0.0
    %2225 = vmatpush1.msra.mxu0 0.0
    %2226 = vmatprep.subr.mxu0 0.0
    %2227 = vmatpush1.msra.mxu0 0.0
    %2228 = vmatprep.subr.mxu0 0.0
    %2229 = vmatpush1.msra.mxu0 0.0
    %2230 = vmatprep.subr.mxu0 0.0
    %2231 = vmatpush1.msra.mxu0 0.0
    %2232 = vmatprep.subr.mxu0 0.0
    %2233 = vmatpush1.msra.mxu0 %v42
    %2234 = vmatprep.subr.mxu0 0.0
    %2235 = vmatpush1.msra.mxu0 %v41
    %2236 = vmatprep.subr.mxu0 0.0
    %2237 = vmatpush2.msra.mxu0 0.0
    %2238 = vmatprep.subr.mxu0 0.0
    %2239 = vmatpush2.msra.mxu0 0.0
    %2240 = vmatprep.subr.mxu0 0.0
    %2241 = vmatpush2.msra.mxu0 0.0
    %2242 = vmatprep.subr.mxu0 0.0
    %2243 = vmatpush2.msra.mxu0 0.0
    %2244 = vmatprep.subr.mxu0 0.0
    %2245 = vmatpush2.msra.mxu0 0.0
    %2246 = vmatprep.subr.mxu0 0.0
    %2247 = vmatpush2.msra.mxu0 0.0
    %2248 = vmatprep.subr.mxu0 0.0
    %2249 = vmatpush2.msra.mxu0 0.0
    %2250 = vmatprep.subr.mxu0 0.0
    %2251 = vmatpush2.msra.mxu0 0.0
    %2252 = vmatprep.subr.mxu0 0.0
    %2253 = vmatpush2.msra.mxu0 0.0
    %2254 = vmatprep.subr.mxu0 0.0
    %2255 = vmatpush2.msra.mxu0 0.0
    %2256 = vmatprep.subr.mxu0 0.0
    %2257 = vmatpush2.msra.mxu0 0.0
    %2258 = vmatprep.subr.mxu0 0.0
    %2259 = vmatpush2.msra.mxu0 0.0
    %2260 = vmatprep.subr.mxu0 0.0
    %2261 = vmatpush2.msra.mxu0 0.0
    %2262 = vmatprep.subr.mxu0 0.0
    %2263 = vmatpush2.msra.mxu0 0.0
    %2264 = vmatprep.subr.mxu0 0.0
    %2265 = vmatpush2.msra.mxu0 0.0
    %2266 = vmatprep.subr.mxu0 0.0
    %2267 = vmatpush2.msra.mxu0 0.0
    %2268 = vmatprep.mubr.f32.mxu0 0.0
    %2269 = vmatmul.mubr.f32.gmra.mxu0 %v2202
    %v2270 = vpop.f32.mrf.mxu0
    %v2271 = vadd.f32 %v2196, %v2270
    %v2272 = vpop.f32.mrf.mxu0
    %2273 = vdwg.mxu0
    %v2274 = vadd.f32 %v2271, %v136
    %v2275 = vxor.u32 %v2274, 2147483648
    %v2276 = vmul.f32 %v2275, 1.442695
    %v2277 = vpow.pop %v2276
    %v2278 = vadd.f32 %v2277, 1.0
    %v2279 = vrcp.pop %v2278
    %v2280 = vmul.f32 1.0, %v2279
    %v2281 = vtanh.pop %v2274
    %v2282 = vmul.f32 %v2280, %v2022
    %2284 = vrot.lane.b32.xlu0 %v2281, 32
    %v2285 = vpop.permute.xlu0 %2284
    %v2287 = vmul.f32 %v2280, %v2285
    %2289 = vrot.lane.b32.xlu0 %v2287, 32
    %v2290 = vpop.permute.xlu0 %2289
    %v2292 = vadd.f32 %v2282, %v2290
    %v2293 = vtanh.pop %v2292
    %2295 = vrot.lane.b32.xlu0 %v2293, 32
    %v2296 = vpop.permute.xlu0 %2295
    %v2298 = vmul.f32 %v2280, %v2296
    %v2299 = vrot.slane %v678, 6
    %v2301 = vrot.slane %v948, 4
    %v2303 = vrot.slane %v1218, 2
    %v2305 = vrot.slane %v1758, 6
    %v2307 = vrot.slane %v2028, 4
    %v2310 = vrot.slane %v2298, 2
    %vm2312 = vcmask 1041408
    %v2313 = vsel %vm2312, %v408, %v2299
    %vm2314 = vcmask 1043456
    %v2315 = vsel %vm2314, %v2313, %v2301
    %vm2316 = vcmask 1045504
    %v2317 = vsel %vm2316, %v2315, %v2303
    %v2318 = vsel %vm2312, %v1488, %v2305
    %v2319 = vsel %vm2314, %v2318, %v2307
    %v2320 = vsel %vm2316, %v2319, %v2310
    %v2321 = vlaneseq
    %v2322 = vshrl.u32 %v2321, 7
    %v2323 = vsub.s32 0, %v2322
    %v2324 = vrot.slane %v53, %v2323
    %2327 = vrot.lane.b32.xlu0 %v2317, 64
    %v2328 = vpop.permute.xlu0 %2327
    %2329 = vrot.lane.b32.xlu0 %v2320, 64
    %v2330 = vpop.permute.xlu0 %2329
    %v2331 = vsel %vm236, %v2328, 0
    %v2333 = vsel %vm236, %v2330, 0
    %2335 = vmatprep.subr.mxu0 0.0
    %2336 = vmatpush1.msra.mxu0 0.0
    %2337 = vmatprep.subr.mxu0 0.0
    %2338 = vmatpush1.msra.mxu0 0.0
    %2339 = vmatprep.subr.mxu0 0.0
    %2340 = vmatpush1.msra.mxu0 0.0
    %2341 = vmatprep.subr.mxu0 0.0
    %2342 = vmatpush1.msra.mxu0 0.0
    %2343 = vmatprep.subr.mxu0 0.0
    %2344 = vmatpush1.msra.mxu0 0.0
    %2345 = vmatprep.subr.mxu0 0.0
    %2346 = vmatpush1.msra.mxu0 0.0
    %2347 = vmatprep.subr.mxu0 0.0
    %2348 = vmatpush1.msra.mxu0 0.0
    %2349 = vmatprep.subr.mxu0 0.0
    %2350 = vmatpush1.msra.mxu0 0.0
    %2351 = vmatprep.subr.mxu0 0.0
    %2352 = vmatpush1.msra.mxu0 0.0
    %2353 = vmatprep.subr.mxu0 0.0
    %2354 = vmatpush1.msra.mxu0 0.0
    %2355 = vmatprep.subr.mxu0 0.0
    %2356 = vmatpush1.msra.mxu0 0.0
    %2357 = vmatprep.subr.mxu0 0.0
    %2358 = vmatpush1.msra.mxu0 0.0
    %2359 = vmatprep.subr.mxu0 0.0
    %2360 = vmatpush1.msra.mxu0 %v50
    %2361 = vmatprep.subr.mxu0 0.0
    %2362 = vmatpush1.msra.mxu0 %v49
    %2363 = vmatprep.subr.mxu0 0.0
    %2364 = vmatpush1.msra.mxu0 %v48
    %2365 = vmatprep.subr.mxu0 0.0
    %2366 = vmatpush1.msra.mxu0 %v47
    %2367 = vmatprep.subr.mxu0 0.0
    %2368 = vmatpush2.msra.mxu0 0.0
    %2369 = vmatprep.subr.mxu0 0.0
    %2370 = vmatpush2.msra.mxu0 0.0
    %2371 = vmatprep.subr.mxu0 0.0
    %2372 = vmatpush2.msra.mxu0 0.0
    %2373 = vmatprep.subr.mxu0 0.0
    %2374 = vmatpush2.msra.mxu0 0.0
    %2375 = vmatprep.subr.mxu0 0.0
    %2376 = vmatpush2.msra.mxu0 0.0
    %2377 = vmatprep.subr.mxu0 0.0
    %2378 = vmatpush2.msra.mxu0 0.0
    %2379 = vmatprep.subr.mxu0 0.0
    %2380 = vmatpush2.msra.mxu0 0.0
    %2381 = vmatprep.subr.mxu0 0.0
    %2382 = vmatpush2.msra.mxu0 0.0
    %2383 = vmatprep.subr.mxu0 0.0
    %2384 = vmatpush2.msra.mxu0 0.0
    %2385 = vmatprep.subr.mxu0 0.0
    %2386 = vmatpush2.msra.mxu0 0.0
    %2387 = vmatprep.subr.mxu0 0.0
    %2388 = vmatpush2.msra.mxu0 0.0
    %2389 = vmatprep.subr.mxu0 0.0
    %2390 = vmatpush2.msra.mxu0 0.0
    %2391 = vmatprep.subr.mxu0 0.0
    %2392 = vmatpush2.msra.mxu0 0.0
    %2393 = vmatprep.subr.mxu0 0.0
    %2394 = vmatpush2.msra.mxu0 0.0
    %2395 = vmatprep.subr.mxu0 0.0
    %2396 = vmatpush2.msra.mxu0 0.0
    %2397 = vmatprep.subr.mxu0 0.0
    %2398 = vmatpush2.msra.mxu0 0.0
    %2399 = vmatprep.mubr.f32.mxu0 0.0
    %2400 = vmatmul.mubr.f32.gmra.mxu0 %v2331
    %v2401 = vpop.f32.mrf.mxu0
    %v2402 = vadd.f32 %v2324, %v2401
    %v2403 = vpop.f32.mrf.mxu0
    %2404 = vmatprep.mubr.f32.mxu0 0.0
    %2405 = vmatmul.mubr.f32.gmra.mxu0 %v2333
    %v2406 = vpop.f32.mrf.mxu0
    %v2407 = vadd.f32 %v2324, %v2406
    %v2408 = vpop.f32.mrf.mxu0
    %2409 = vdwg.mxu0
    %2410 = vst [vmem:[#allocation7] sm:$0xff] %v2402
    %2411 = vst [vmem:[#allocation7 + $0x8] sm:$0xff] %v2407
    // Predicated region
    $region18: #{tpu_custom_call.1} parent=1 // pred_check
      _
    $region19: #{tpu_custom_call.1} parent=1 // pred_check_branch
      %2413 = sbr.rel (0) target = $region21
    $region20: #{tpu_custom_call.1} parent=1 // pred_region
      %s2415 = ssub.s32 256, 256
      %2416 = vsyncadd [#allocation4], %s2415
      %s2417 = sshll.u32 [#allocation7], 4
      %s2418 = int_to_ptr.vmem [resolvable:$true] %s2417
      %2423 = dma.vmem_to_hbm [thread:$0]  %s2418, 256, %s2, [#allocation4], 128, 128, 8
    $region21: #{tpu_custom_call.1} parent=1 // pred_fallthru
      _
    // Predicated region
    $region22: #{tpu_custom_call.1} parent=1 // pred_check
      _
    $region23: #{tpu_custom_call.1} parent=1 // pred_check_branch
      %2425 = sbr.rel (0) target = $region25
    $region24: #{tpu_custom_call.1} parent=1 // pred_region
      %2426 = dma.done [#allocation4], 256
    $region25: #{tpu_custom_call.1} parent=1 // pred_fallthru
      _
    %2427 = vsyncpa [#allocation3], 1
    %2428 = vsyncpa [#allocation6], 1
    %2429 = vsyncpa [#allocation4], 1

</llo_original>
